<compile_context>
chip_gen: v7x
topology: tpu7x:2x2x1
jax: 0.10.0
libtpu: 0.0.40
codegen_flags: <defaults>
</compile_context>

<pallas_src>
import functools

import jax
import jax.numpy as jnp
from jax import lax
from jax.experimental import pallas as pl
from jax.experimental.pallas import tpu as pltpu


def _comp_attn_kernel(x_ref, w_ref, b_ref, gamma_ref, out_ref, attn_ref, *, c, c8):
    """Per-batch-element fused Comp_Attn forward.

    x_ref:   (1, c, HW)        input, channels-first, HW on lanes
    w_ref:   (4*c8 + c, c)     stacked projection weights [A_rq; A_cq; A_rk; A_ck; Wv]
    b_ref:   (4*c8 + c, 1)     matching stacked biases
    gamma_ref: (1,) in SMEM    learned residual scale
    out_ref: (1, c, HW)        gamma * (V @ attn^T) + x
    attn_ref:(1, HW, HW)       softmax attention
    """
    X = x_ref[0]                                                        # (c, HW)

    # All five 1x1-conv projections in one MXU matmul (+ bias broadcast along lanes).
    P = jnp.dot(w_ref[...], X, preferred_element_type=jnp.float32) + b_ref[...]   # (4*c8+c, HW)

    QQ = P[0:2 * c8]             # [re_q; co_q]  (2*c8, HW)   -- rows are 8-aligned slices
    KK = P[2 * c8:4 * c8]        # [re_k; co_k]  (2*c8, HW)
    V = P[4 * c8:4 * c8 + c]     # proj_v        (c, HW)

    # energy[i, j] = re_q[:,i].re_k[:,j] + co_q[:,i].co_k[:,j]  ==  (QQ^T @ KK)[i, j]
    energy = lax.dot_general(QQ, KK, (((0,), (0,)), ((), ())),
                             preferred_element_type=jnp.float32)        # (HW, HW)

    # Row softmax over the last (lane) axis — single stable pass.
    m = jnp.max(energy, axis=-1, keepdims=True)
    e = jnp.exp(energy - m)
    attn = e / jnp.sum(e, axis=-1, keepdims=True)
    attn_ref[0] = attn                                                  # lane-dense store

    # out[ch, i] = sum_j proj_v[ch, j] * attn[i, j]   ==  bmm(proj_v, attention^T)
    out = lax.dot_general(V, attn, (((1,), (1,)), ((), ())),
                          preferred_element_type=jnp.float32)           # (c, HW)

    out_ref[0] = gamma_ref[0] * out + X                                 # residual, lane-dense


def comp_attn_forward(x_nchw, params, gamma):
    """x_nchw: (N, c, H, W). params: dict of (weight, bias) for q,k,v,c1..c4. gamma: scalar."""
    N, c, H, W = x_nchw.shape
    HW = H * W
    Wq, bq = params["q"]
    Wk, bk = params["k"]
    Wv, bv = params["v"]
    Wc1, bc1 = params["c1"]
    Wc2, bc2 = params["c2"]
    Wc3, bc3 = params["c3"]
    Wc4, bc4 = params["c4"]
    c8 = Wq.shape[0]
    rows = 4 * c8 + c

    # Fold com_conv_i o {q,k}_conv into single linear maps (exact) and stack with Wv so the
    # kernel does ONE matmul for all projections.  Pure parameter glue, done once.
    A = jnp.concatenate([Wc1 @ Wq, Wc2 @ Wq, Wc3 @ Wk, Wc4 @ Wk, Wv], axis=0).astype(jnp.float32)
    b_all = jnp.concatenate([Wc1 @ bq + bc1, Wc2 @ bq + bc2,
                             Wc3 @ bk + bc3, Wc4 @ bk + bc4, bv], axis=0).astype(jnp.float32)[:, None]

    x_flat = x_nchw.reshape(N, c, HW).astype(jnp.float32)   # NCHW flatten: free, HW on lanes
    gamma_arr = jnp.reshape(jnp.asarray(gamma, jnp.float32), (1,))

    kern = functools.partial(_comp_attn_kernel, c=c, c8=c8)
    out_flat, attention = pl.pallas_call(
        kern,
        out_shape=(jax.ShapeDtypeStruct((N, c, HW), jnp.float32),
                   jax.ShapeDtypeStruct((N, HW, HW), jnp.float32)),
        grid=(N,),
        in_specs=[
            pl.BlockSpec((1, c, HW), lambda n: (n, 0, 0)),
            pl.BlockSpec((rows, c), lambda n: (0, 0)),
            pl.BlockSpec((rows, 1), lambda n: (0, 0)),
            pl.BlockSpec(memory_space=pltpu.MemorySpace.SMEM),   # gamma scalar
        ],
        out_specs=(
            pl.BlockSpec((1, c, HW), lambda n: (n, 0, 0)),
            pl.BlockSpec((1, HW, HW), lambda n: (n, 0, 0)),
        ),
        compiler_params=pltpu.CompilerParams(dimension_semantics=("parallel",)),
    )(x_flat, A, b_all, gamma_arr)

    return out_flat.reshape(N, c, H, W), attention


def _reference_forward(x, p, gamma):
    """Pure-JAX literal transcription of the PyTorch forward (for validation)."""
    N, c, H, W = x.shape
    hp = lax.Precision.HIGHEST

    def conv1x1(z, Wm, bm):
        return jnp.einsum("oc,bchw->bohw", Wm, z, precision=hp) + bm[None, :, None, None]

    proj_q = conv1x1(x, *p["q"])
    proj_k = conv1x1(x, *p["k"])
    re_q = conv1x1(proj_q, *p["c1"]).reshape(N, -1, H * W).transpose(0, 2, 1)
    co_q = conv1x1(proj_q, *p["c2"]).reshape(N, -1, H * W).transpose(0, 2, 1)
    re_k = conv1x1(proj_k, *p["c3"]).reshape(N, -1, H * W)
    co_k = conv1x1(proj_k, *p["c4"]).reshape(N, -1, H * W)
    energy = jnp.matmul(re_q, re_k, precision=hp) + jnp.matmul(co_q, co_k, precision=hp)
    attention = jax.nn.softmax(energy, axis=-1)
    proj_v = conv1x1(x, *p["v"]).reshape(N, c, H * W)
    out = jnp.matmul(proj_v, jnp.transpose(attention, (0, 2, 1)), precision=hp)
    out = out.reshape(N, c, H, W)
    return gamma * out + x, attention


if __name__ == "__main__":
    N, in_dim, H, W = 2, 32, 16, 16          # in_dim must be a multiple of 8 (in_dim // 8 heads)
    c8 = in_dim // 8

    key = jax.random.PRNGKey(0)
    keys = jax.random.split(key, 8)

    def conv_params(k, cout, cin):
        # Conv2d default init for 1x1: U(-1/sqrt(fan_in), 1/sqrt(fan_in)), fan_in = cin.
        kw, kb = jax.random.split(k)
        bound = 1.0 / jnp.sqrt(cin)
        Wm = jax.random.uniform(kw, (cout, cin), jnp.float32, -bound, bound)
        bm = jax.random.uniform(kb, (cout,), jnp.float32, -bound, bound)
        return Wm, bm

    x = jax.random.normal(keys[0], (N, in_dim, H, W), dtype=jnp.float32)
    params = {
        "q": conv_params(keys[1], c8, in_dim),
        "k": conv_params(keys[2], c8, in_dim),
        "v": conv_params(keys[3], in_dim, in_dim),
        "c1": conv_params(keys[4], c8, c8),
        "c2": conv_params(keys[5], c8, c8),
        "c3": conv_params(keys[6], c8, c8),
        "c4": conv_params(keys[7], c8, c8),
    }
    # gamma is a learned scalar (initialized to 0 in the module); use a nonzero value here so
    # the full out = gamma * (V @ attn^T) + x path is actually exercised by the check.
    gamma = jnp.float32(0.5)

    out, attn = comp_attn_forward(x, params, gamma)
    out = jax.block_until_ready(out)
    attn = jax.block_until_ready(attn)

    ref_out, ref_attn = _reference_forward(x, params, gamma)

    assert out.shape == (N, in_dim, H, W)
    assert attn.shape == (N, H * W, H * W)
    assert jnp.allclose(attn, ref_attn, rtol=1e-3, atol=1e-4), float(jnp.max(jnp.abs(attn - ref_attn)))
    assert jnp.allclose(out, ref_out, rtol=1e-3, atol=1e-3), float(jnp.max(jnp.abs(out - ref_out)))

    print("KERNEL_OK")
</pallas_src>

<mosaic_0001>
module attributes {stable_mosaic.version = 11 : i64} {
  func.func @_comp_attn_kernel(%arg0: i32, %arg1: memref<1x32x256xf32, #tpu.memory_space<vmem>>, %arg2: memref<48x32xf32, #tpu.memory_space<vmem>>, %arg3: memref<48x1xf32, #tpu.memory_space<vmem>>, %arg4: memref<1xf32, #tpu.memory_space<smem>>, %arg5: memref<1x32x256xf32, #tpu.memory_space<vmem>>, %arg6: memref<1x256x256xf32, #tpu.memory_space<vmem>>) attributes {dimension_semantics = [#tpu.dimension_semantics<parallel>], iteration_bounds = array<i64: 2>, scalar_prefetch = 0 : i64, scratch_operands = 0 : i64, tpu.core_type = #tpu.core_type<tc>, window_params = [{transform_indices = @transform_0, window_bounds = array<i64: 1, 32, 256>}, {pipeline_mode = #tpu.pipeline_mode<synchronous>, transform_indices = @transform_1, window_bounds = array<i64: 48, 32>}, {pipeline_mode = #tpu.pipeline_mode<synchronous>, transform_indices = @transform_2, window_bounds = array<i64: 48, 1>}, {transform_indices = @transform_3, window_bounds = array<i64: 1>}, {transform_indices = @transform_4, window_bounds = array<i64: 1, 32, 256>}, {transform_indices = @transform_5, window_bounds = array<i64: 1, 256, 256>}]} {
    %c0 = arith.constant 0 : index
    %c0_0 = arith.constant 0 : index
    %c0_1 = arith.constant 0 : index
    %0 = vector.load %arg1[%c0, %c0_0, %c0_1] : memref<1x32x256xf32, #tpu.memory_space<vmem>>, vector<1x32x256xf32>
    %1 = vector.shape_cast %0 : vector<1x32x256xf32> to vector<32x256xf32>
    %c0_2 = arith.constant 0 : index
    %c0_3 = arith.constant 0 : index
    %2 = vector.load %arg2[%c0_2, %c0_3] : memref<48x32xf32, #tpu.memory_space<vmem>>, vector<48x32xf32>
    %cst = arith.constant dense<0.000000e+00> : vector<48x256xf32>
    %3 = tpu.matmul %2, %1, %cst {dimension_numbers = #tpu.dot_dimension_numbers<[1], [0], [0], [1], [0, 0, 1, 1], [], []>} : vector<48x32xf32>, vector<32x256xf32>, vector<48x256xf32> -> vector<48x256xf32>
    %c0_4 = arith.constant 0 : index
    %c0_5 = arith.constant 0 : index
    %4 = vector.load %arg3[%c0_4, %c0_5] : memref<48x1xf32, #tpu.memory_space<vmem>>, vector<48x1xf32>
    %5 = vector.broadcast %4 : vector<48x1xf32> to vector<48x256xf32>
    %6 = arith.addf %3, %5 : vector<48x256xf32>
    %7 = vector.extract_strided_slice %6 {offsets = [0, 0], sizes = [8, 256], strides = [1, 1]} : vector<48x256xf32> to vector<8x256xf32>
    %8 = vector.extract_strided_slice %6 {offsets = [8, 0], sizes = [8, 256], strides = [1, 1]} : vector<48x256xf32> to vector<8x256xf32>
    %9 = vector.extract_strided_slice %6 {offsets = [16, 0], sizes = [32, 256], strides = [1, 1]} : vector<48x256xf32> to vector<32x256xf32>
    %cst_6 = arith.constant dense<0.000000e+00> : vector<256x256xf32>
    %10 = tpu.matmul %7, %8, %cst_6 {dimension_numbers = #tpu.dot_dimension_numbers<[0], [0], [1], [1], [0, 1, 1, 1], [], []>} : vector<8x256xf32>, vector<8x256xf32>, vector<256x256xf32> -> vector<256x256xf32>
    %cst_7 = arith.constant dense<0xFF800000> : vector<256xf32>
    %11 = vector.multi_reduction <maximumf>, %10, %cst_7 [1] : vector<256x256xf32> to vector<256xf32>
    %12 = vector.shape_cast %11 : vector<256xf32> to vector<256x1xf32>
    %13 = vector.broadcast %12 : vector<256x1xf32> to vector<256x256xf32>
    %14 = arith.subf %10, %13 : vector<256x256xf32>
    %15 = math.exp %14 : vector<256x256xf32>
    %cst_8 = arith.constant dense<0.000000e+00> : vector<256xf32>
    %16 = vector.multi_reduction <add>, %15, %cst_8 [1] : vector<256x256xf32> to vector<256xf32>
    %17 = vector.shape_cast %16 : vector<256xf32> to vector<256x1xf32>
    %18 = vector.broadcast %17 : vector<256x1xf32> to vector<256x256xf32>
    %19 = arith.divf %15, %18 : vector<256x256xf32>
    %c0_9 = arith.constant 0 : index
    %c0_10 = arith.constant 0 : index
    %c0_11 = arith.constant 0 : index
    %20 = vector.load %arg6[%c0_9, %c0_10, %c0_11] : memref<1x256x256xf32, #tpu.memory_space<vmem>>, vector<1x256x256xf32>
    %21 = vector.shape_cast %20 : vector<1x256x256xf32> to vector<256x256xf32>
    %22 = vector.shape_cast %19 : vector<256x256xf32> to vector<1x256x256xf32>
    tpu.vector_store %arg6[%c0_9, %c0_10, %c0_11], %22 {strides = array<i32>} : memref<1x256x256xf32, #tpu.memory_space<vmem>>, vector<1x256x256xf32>,
    %cst_12 = arith.constant dense<0.000000e+00> : vector<32x256xf32>
    %23 = tpu.matmul %9, %19, %cst_12 {dimension_numbers = #tpu.dot_dimension_numbers<[1], [1], [0], [0], [0, 0, 1, 0], [], []>} : vector<32x256xf32>, vector<256x256xf32>, vector<32x256xf32> -> vector<32x256xf32>
    %c0_13 = arith.constant 0 : index
    %24 = memref.load %arg4[%c0_13] : memref<1xf32, #tpu.memory_space<smem>>
    %25 = vector.broadcast %24 : f32 to vector<32x256xf32>
    %26 = arith.mulf %25, %23 : vector<32x256xf32>
    %27 = arith.addf %26, %1 : vector<32x256xf32>
    %c0_14 = arith.constant 0 : index
    %c0_15 = arith.constant 0 : index
    %c0_16 = arith.constant 0 : index
    %28 = vector.load %arg5[%c0_14, %c0_15, %c0_16] : memref<1x32x256xf32, #tpu.memory_space<vmem>>, vector<1x32x256xf32>
    %29 = vector.shape_cast %28 : vector<1x32x256xf32> to vector<32x256xf32>
    %30 = vector.shape_cast %27 : vector<32x256xf32> to vector<1x32x256xf32>
    tpu.vector_store %arg5[%c0_14, %c0_15, %c0_16], %30 {strides = array<i32>} : memref<1x32x256xf32, #tpu.memory_space<vmem>>, vector<1x32x256xf32>,
    return
  }
  func.func @transform_0(%arg0: i32) -> (i32, i32, i32) {
    %c0_i32 = arith.constant 0 : i32
    %c0_i32_0 = arith.constant 0 : i32
    %c0_i32_1 = arith.constant 0 : i32
    return %arg0, %c0_i32, %c0_i32_0 : i32, i32, i32
  }
  func.func @transform_1(%arg0: i32) -> (i32, i32) {
    %c0_i32 = arith.constant 0 : i32
    %c0_i32_0 = arith.constant 0 : i32
    %c0_i32_1 = arith.constant 0 : i32
    return %c0_i32, %c0_i32_0 : i32, i32
  }
  func.func @transform_2(%arg0: i32) -> (i32, i32) {
    %c0_i32 = arith.constant 0 : i32
    %c0_i32_0 = arith.constant 0 : i32
    %c0_i32_1 = arith.constant 0 : i32
    return %c0_i32, %c0_i32_0 : i32, i32
  }
  func.func @transform_3(%arg0: i32) -> i32 {
    %c0_i32 = arith.constant 0 : i32
    %c0_i32_0 = arith.constant 0 : i32
    return %c0_i32 : i32
  }
  func.func @transform_4(%arg0: i32) -> (i32, i32, i32) {
    %c0_i32 = arith.constant 0 : i32
    %c0_i32_0 = arith.constant 0 : i32
    %c0_i32_1 = arith.constant 0 : i32
    return %arg0, %c0_i32, %c0_i32_0 : i32, i32, i32
  }
  func.func @transform_5(%arg0: i32) -> (i32, i32, i32) {
    %c0_i32 = arith.constant 0 : i32
    %c0_i32_0 = arith.constant 0 : i32
    %c0_i32_1 = arith.constant 0 : i32
    return %arg0, %c0_i32, %c0_i32_0 : i32, i32, i32
  }
}

</mosaic_0001>

<llo_original>
// kernel: tpu_custom_call.1
$region0: #{tpu_custom_call.1}
  #allocation0 [shape = 'u32[]', space=smem, size = 0x4, offset = 0x4, fixed_abs, tag = 'smem constant byte address 0x4 - core index']
  #allocation1 [shape = 'u32[144,128]{1,0:T(1,128)}', space=vmem, size = 0x12000, scoped, tag = 'internal scratch']
  #allocation2 [shape = 'f32[1]{0:T(128)S(6)}', space=smem, size = 0x200, scoped, tag = 'scoped memory for tpu_custom_call.1']
  %s0 = inlined_call_operand.vmem [shape: f32[2,32,256], index: 0, kind: input, shape index: {}]
  %s1 = inlined_call_operand.vmem [shape: f32[48,32], index: 1, kind: input, shape index: {}]
  %s2 = inlined_call_operand.vmem [shape: f32[48,1], index: 2, kind: input, shape index: {}]
  %s3 = inlined_call_operand.<no memory space> [shape: f32[1], index: 3, kind: input, shape index: {}]
  %s4 = inlined_call_operand.hbm [shape: f32[2,32,256], index: 4, kind: output, shape index: {0}]
  %s5 = inlined_call_operand.hbm [shape: f32[2,256,256], index: 5, kind: output, shape index: {1}]
  %6 = xla_tuple %s4, %s5
  %s7 = sld [smem:[#allocation0]]
  $region57: #{tpu_custom_call.1} parent=0
    _
  %s9 = ssub.s32 1, %s7
  %s10 = scalar_select 0, %s9, %s7
  %11 = sst [smem:[#allocation2]] %s3
  $region1: #{tpu_custom_call.1} parent=0
    #allocation3 [shape = 'u8[65536]{0}', space=vmem, size = 0x10000, scoped, tag = 'output window, operand 0']
    #allocation4 [shape = 's32[2]{0}', space=sflag, size = 0x8, scoped, tag = 'scoped memory for tpu_custom_call.1']
    #allocation5 [shape = 'u8[524288]{0}', space=vmem, size = 0x80000, scoped, tag = 'output window, operand 1']
    #allocation6 [shape = 's32[2]{0}', space=sflag, size = 0x8, scoped, tag = 'scoped memory for tpu_custom_call.1']
    %12 = vsyncpa [#allocation4], 0
    %s13 = scalar_lea.sflag [#allocation4], 1
    %14 = vsyncpa %s13, 0
    %15 = vsyncpa [#allocation6], 0
    %s16 = scalar_lea.sflag [#allocation6], 1
    %17 = vsyncpa %s16, 0
    loop: start=0, step=1, limit=4
    $region2: #{tpu_custom_call.1} parent=1 // loop_pre_header
      _
    $region3: #{tpu_custom_call.1} parent=1 // loop_header
      %s19 = sphi 0, %s23
      %p20 = scmp.ge.s32.totalorder %s19, 4
      %s29 = sphi 0, %s31
      %s32 = sphi 0, %s29
      %s33 = sphi 0, %s32
      %s49 = sphi 0, %s33
      %s53 = sphi 0, %s53
      %s55 = sphi 0, %s53
      %s56 = sphi 0, %s55
      %s70 = sphi 0, %s56
      %s74 = sphi 0, %s74
      %s76 = sphi 0, %s74
      %s77 = sphi 0, %s76
      %s91 = sphi 0, %s77
      %s95 = sphi 0, %s95
      %s97 = sphi 0, %s95
      %s98 = sphi 0, %s97
      %s112 = sphi 0, %s98
      %s118 = sphi 0, %s120
      %s121 = sphi 0, %s118
      %s122 = sphi 0, %s121
      %s138 = sphi 0, %s122
      %s144 = sphi 0, %s146
      %s147 = sphi 0, %s144
      %s148 = sphi 0, %s147
      %s164 = sphi 0, %s148
    $region4: #{tpu_custom_call.1} parent=1 // loop_header_branch
      %22 = sbr.rel (%p20) target = $region8
    $region5: #{tpu_custom_call.1} parent=1 // loop_body
      %s24 = ssub.s32 %s19, 1
      %s25 = ssub.s32 %s19, 2
      %s26 = sadd.s32 %s19, 1
      %s27 = ssub.s32 %s19, %s26
      %p28 = scmp.eq.s32.totalorder %s27, 0
      %s30 = sadd.s32 %s29, 1
      %s31 = scalar_select %p28, %s29, %s30
      %p34 = pneg %p28
      %p35 = scmp.eq.s32.totalorder %s19, 1
      %p36 = por %p34, %p35
      %p37 = scmp.ne.s32.totalorder %s29, %s32
      %p38 = scmp.eq.s32.totalorder %s19, 0
      %p39 = por %p37, %p38
      %p40 = scmp.ne.s32.totalorder %s29, %s32
      %p41 = scmp.eq.s32.totalorder %s24, 1
      %p42 = por %p40, %p41
      %p43 = scmp.ne.s32.totalorder %s32, %s33
      %p44 = scmp.eq.s32.totalorder %s24, 0
      %p45 = por %p43, %p44
      %p46 = scmp.ne.s32.totalorder %s32, %s33
      %p47 = scmp.eq.s32.totalorder %s25, 1
      %p48 = por %p46, %p47
      %p50 = scmp.ne.s32.totalorder %s33, %s49
      %p51 = scmp.eq.s32.totalorder %s25, 0
      %p52 = por %p50, %p51
      %s54 = sadd.s32 %s53, 1
      %p57 = scmp.eq.s32.totalorder %s19, 1
      %p58 = scmp.ne.s32.totalorder %s53, %s55
      %p59 = scmp.eq.s32.totalorder %s19, 0
      %p60 = por %p58, %p59
      %p61 = scmp.ne.s32.totalorder %s53, %s55
      %p62 = scmp.eq.s32.totalorder %s24, 1
      %p63 = por %p61, %p62
      %p64 = scmp.ne.s32.totalorder %s55, %s56
      %p65 = scmp.eq.s32.totalorder %s24, 0
      %p66 = por %p64, %p65
      %p67 = scmp.ne.s32.totalorder %s55, %s56
      %p68 = scmp.eq.s32.totalorder %s25, 1
      %p69 = por %p67, %p68
      %p71 = scmp.ne.s32.totalorder %s56, %s70
      %p72 = scmp.eq.s32.totalorder %s25, 0
      %p73 = por %p71, %p72
      %s75 = sadd.s32 %s74, 1
      %p78 = scmp.eq.s32.totalorder %s19, 1
      %p79 = scmp.ne.s32.totalorder %s74, %s76
      %p80 = scmp.eq.s32.totalorder %s19, 0
      %p81 = por %p79, %p80
      %p82 = scmp.ne.s32.totalorder %s74, %s76
      %p83 = scmp.eq.s32.totalorder %s24, 1
      %p84 = por %p82, %p83
      %p85 = scmp.ne.s32.totalorder %s76, %s77
      %p86 = scmp.eq.s32.totalorder %s24, 0
      %p87 = por %p85, %p86
      %p88 = scmp.ne.s32.totalorder %s76, %s77
      %p89 = scmp.eq.s32.totalorder %s25, 1
      %p90 = por %p88, %p89
      %p92 = scmp.ne.s32.totalorder %s77, %s91
      %p93 = scmp.eq.s32.totalorder %s25, 0
      %p94 = por %p92, %p93
      %s96 = sadd.s32 %s95, 1
      %p99 = scmp.eq.s32.totalorder %s19, 1
      %p100 = scmp.ne.s32.totalorder %s95, %s97
      %p101 = scmp.eq.s32.totalorder %s19, 0
      %p102 = por %p100, %p101
      %p103 = scmp.ne.s32.totalorder %s95, %s97
      %p104 = scmp.eq.s32.totalorder %s24, 1
      %p105 = por %p103, %p104
      %p106 = scmp.ne.s32.totalorder %s97, %s98
      %p107 = scmp.eq.s32.totalorder %s24, 0
      %p108 = por %p106, %p107
      %p109 = scmp.ne.s32.totalorder %s97, %s98
      %p110 = scmp.eq.s32.totalorder %s25, 1
      %p111 = por %p109, %p110
      %p113 = scmp.ne.s32.totalorder %s98, %s112
      %p114 = scmp.eq.s32.totalorder %s25, 0
      %p115 = por %p113, %p114
      %s116 = ssub.s32 %s19, %s26
      %p117 = scmp.eq.s32.totalorder %s116, 0
      %s119 = sadd.s32 %s118, 1
      %s120 = scalar_select %p117, %s118, %s119
      %p123 = pneg %p117
      %p124 = scmp.eq.s32.totalorder %s19, 1
      %p125 = por %p123, %p124
      %p126 = scmp.ne.s32.totalorder %s118, %s121
      %p127 = scmp.eq.s32.totalorder %s19, 0
      %p128 = por %p126, %p127
      %p129 = scmp.ne.s32.totalorder %s118, %s121
      %p130 = scmp.eq.s32.totalorder %s24, 1
      %p131 = por %p129, %p130
      %p132 = scmp.ne.s32.totalorder %s121, %s122
      %p133 = scmp.eq.s32.totalorder %s24, 0
      %p134 = por %p132, %p133
      %p135 = scmp.ne.s32.totalorder %s121, %s122
      %p136 = scmp.eq.s32.totalorder %s25, 1
      %p137 = por %p135, %p136
      %p139 = scmp.ne.s32.totalorder %s122, %s138
      %p140 = scmp.eq.s32.totalorder %s25, 0
      %p141 = por %p139, %p140
      %s142 = ssub.s32 %s19, %s26
      %p143 = scmp.eq.s32.totalorder %s142, 0
      %s145 = sadd.s32 %s144, 1
      %s146 = scalar_select %p143, %s144, %s145
      %p149 = pneg %p143
      %p150 = scmp.eq.s32.totalorder %s19, 1
      %p151 = por %p149, %p150
      %p152 = scmp.ne.s32.totalorder %s144, %s147
      %p153 = scmp.eq.s32.totalorder %s19, 0
      %p154 = por %p152, %p153
      %p155 = scmp.ne.s32.totalorder %s144, %s147
      %p156 = scmp.eq.s32.totalorder %s24, 1
      %p157 = por %p155, %p156
      %p158 = scmp.ne.s32.totalorder %s147, %s148
      %p159 = scmp.eq.s32.totalorder %s24, 0
      %p160 = por %p158, %p159
      %p161 = scmp.ne.s32.totalorder %s147, %s148
      %p162 = scmp.eq.s32.totalorder %s25, 1
      %p163 = por %p161, %p162
      %p165 = scmp.ne.s32.totalorder %s148, %s164
      %p166 = scmp.eq.s32.totalorder %s25, 0
      %p167 = por %p165, %p166
      %p168 = scmp.le.s32.totalorder 1, %s19
      %p169 = scmp.lt.s32.totalorder %s19, 3
      %p170 = pnand %p168, %p169
      %p171 = pneg %p170
      // Predicated region
      $region9: #{tpu_custom_call.1} parent=5 // pred_check
        _
      $region10: #{tpu_custom_call.1} parent=5 // pred_check_branch
        %173 = sbr.rel (%p170) target = $region12
      $region11: #{tpu_custom_call.1} parent=5 // pred_region
        %s174 = ssub.s32 %s19, 1
        // Predicated region
        $region13: #{tpu_custom_call.1} parent=11 // pred_check
          %p175 = pneg %p66
        $region14: #{tpu_custom_call.1} parent=11 // pred_check_branch
          %177 = sbr.rel (%p175) target = $region16
        $region15: #{tpu_custom_call.1} parent=11 // pred_region
          _
        $region16: #{tpu_custom_call.1} parent=11 // pred_fallthru
          _
        // Predicated region
        $region17: #{tpu_custom_call.1} parent=11 // pred_check
          %p178 = pneg %p87
        $region18: #{tpu_custom_call.1} parent=11 // pred_check_branch
          %180 = sbr.rel (%p178) target = $region20
        $region19: #{tpu_custom_call.1} parent=11 // pred_region
          _
        $region20: #{tpu_custom_call.1} parent=11 // pred_fallthru
          _
        // Predicated region
        $region21: #{tpu_custom_call.1} parent=11 // pred_check
          %p181 = pneg %p108
        $region22: #{tpu_custom_call.1} parent=11 // pred_check_branch
          %183 = sbr.rel (%p181) target = $region24
        $region23: #{tpu_custom_call.1} parent=11 // pred_region
          _
        $region24: #{tpu_custom_call.1} parent=11 // pred_fallthru
          _
      $region12: #{tpu_custom_call.1} parent=5 // pred_fallthru
        _
      %p184 = scmp.lt.s32.totalorder %s19, 2
      // Predicated region
      $region25: #{tpu_custom_call.1} parent=5 // pred_check
        %p185 = pneg %p184
      $region26: #{tpu_custom_call.1} parent=5 // pred_check_branch
        %187 = sbr.rel (%p185) target = $region28
      $region27: #{tpu_custom_call.1} parent=5 // pred_region
        // Predicated region
        $region29: #{tpu_custom_call.1} parent=27 // pred_check
          %p188 = pneg %p39
        $region30: #{tpu_custom_call.1} parent=27 // pred_check_branch
          %190 = sbr.rel (%p188) target = $region32
        $region31: #{tpu_custom_call.1} parent=27 // pred_region
          %p191 = scmp.lt.s32.totalorder %s19, 1
          %s192 = scalar_select %p191, %s19, 1
          %s193 = smul.addr %s192, 8
          %s194 = smul.addr %s193, 8
          %s195 = scalar_lea.vmem %s0, %s194
        $region32: #{tpu_custom_call.1} parent=27 // pred_fallthru
          _
      $region28: #{tpu_custom_call.1} parent=5 // pred_fallthru
        _
      %p196 = scmp.le.s32.totalorder 1, %s19
      %p197 = scmp.lt.s32.totalorder %s19, 3
      %p198 = pnand %p196, %p197
      %p199 = pneg %p198
      // Predicated region
      $region33: #{tpu_custom_call.1} parent=5 // pred_check
        _
      $region34: #{tpu_custom_call.1} parent=5 // pred_check_branch
        %201 = sbr.rel (%p198) target = $region36
      $region35: #{tpu_custom_call.1} parent=5 // pred_region
        %s202 = ssub.s32 %s19, 1
        %p203 = scmp.lt.s32.totalorder %s24, 1
        %s204 = scalar_select %p203, %s24, 1
        %s205 = smul.addr %s204, 8
        %s206 = smul.addr %s205, 8
        %s207 = scalar_lea.vmem %s0, %s206
        %p208 = pneg %p45
        %p209 = pneg %p42
        %p210 = pneg %p66
        %p211 = pneg %p63
        %p212 = pneg %p87
        %p213 = pneg %p84
        %p214 = pneg %p108
        %p215 = pneg %p105
        %p216 = pneg %p134
        %p217 = pneg %p131
        %s218 = sand.u32 %s121, 1
        %s219 = scalar_lea.sflag [#allocation4], %s218
        %s220 = sand.u32 %s121, 1
        %s221 = smul.addr %s220, 64
        %s222 = scalar_lea.vmem [#allocation3], %s221
        %p223 = pneg %p160
        %p224 = pneg %p157
        %s225 = sand.u32 %s147, 1
        %s226 = scalar_lea.sflag [#allocation6], %s225
        %s227 = sand.u32 %s147, 1
        %s228 = smul.addr %s227, 512
        %s229 = scalar_lea.vmem [#allocation5], %s228
        %p230 = scmp.lt.s32.totalorder %s24, 1
        %s231 = scalar_select %p230, %s24, 1
        %s232 = smul.addr %s231, 8
        %s233 = smul.addr %s232, 8
        %s234 = scalar_lea.vmem %s0, %s233
        %v235 = vld [vmem:[%s234] sm:$0xff]
        %v236 = vld [vmem:[%s234 + $0x8] sm:$0xff]
        %v237 = vld [vmem:[%s234 + $0x10] sm:$0xff]
        %v238 = vld [vmem:[%s234 + $0x18] sm:$0xff]
        %v239 = vld [vmem:[%s234 + $0x20] sm:$0xff]
        %v240 = vld [vmem:[%s234 + $0x28] sm:$0xff]
        %v241 = vld [vmem:[%s234 + $0x30] sm:$0xff]
        %v242 = vld [vmem:[%s234 + $0x38] sm:$0xff]
        %v243 = vld [vmem:[%s1] sm:$0xff]
        %v244 = vld [vmem:[%s1 + $0x8] sm:$0xff]
        %v245 = vld [vmem:[%s1 + $0x10] sm:$0xff]
        %v246 = vld [vmem:[%s1 + $0x18] sm:$0xff]
        %v247 = vld [vmem:[%s1 + $0x20] sm:$0xff]
        %v248 = vld [vmem:[%s1 + $0x28] sm:$0xff]
        %v249 = vld [vmem:[%s2] sm:$0xff]
        %v250 = vld [vmem:[%s2 + $0x8] sm:$0xff]
        %v251 = vld [vmem:[%s2 + $0x10] sm:$0xff]
        %v252 = vld [vmem:[%s2 + $0x18] sm:$0xff]
        %v253 = vld [vmem:[%s2 + $0x20] sm:$0xff]
        %v254 = vld [vmem:[%s2 + $0x28] sm:$0xff]
        %256 = vset.pattern.permute.xlu0 0
        %257 = vperm.xlu0 %256, %v249
        %v258 = vpop.permute.xlu0 %257
        %261 = vset.pattern.permute.xlu0 0
        %262 = vperm.xlu0 %261, %v250
        %v263 = vpop.permute.xlu0 %262
        %266 = vset.pattern.permute.xlu0 0
        %267 = vperm.xlu0 %266, %v251
        %v268 = vpop.permute.xlu0 %267
        %271 = vset.pattern.permute.xlu0 0
        %272 = vperm.xlu0 %271, %v252
        %v273 = vpop.permute.xlu0 %272
        %276 = vset.pattern.permute.xlu0 0
        %277 = vperm.xlu0 %276, %v253
        %v278 = vpop.permute.xlu0 %277
        %281 = vset.pattern.permute.xlu0 0
        %282 = vperm.xlu0 %281, %v254
        %v283 = vpop.permute.xlu0 %282
        %vm285 = vcmask 261120
        %v287 = vsel %vm285, %v243, 0
        %v290 = vsel %vm285, %v244, 0
        %v293 = vsel %vm285, %v245, 0
        %v296 = vsel %vm285, %v246, 0
        %v299 = vsel %vm285, %v247, 0
        %v302 = vsel %vm285, %v248, 0
        %304 = vmatprep.subr.mxu0 %v236
        %305 = vmatpush1.msra.mxu0 %v235
        %306 = vmatprep.subr.mxu0 %v238
        %307 = vmatpush1.msra.mxu0 %v237
        %308 = vmatprep.subr.mxu0 %v240
        %309 = vmatpush1.msra.mxu0 %v239
        %310 = vmatprep.subr.mxu0 %v242
        %311 = vmatpush1.msra.mxu0 %v241
        %312 = vmatprep.subr.mxu0 0.0
        %313 = vmatpush1.msra.mxu0 0.0
        %314 = vmatprep.subr.mxu0 0.0
        %315 = vmatpush1.msra.mxu0 0.0
        %316 = vmatprep.subr.mxu0 0.0
        %317 = vmatpush1.msra.mxu0 0.0
        %318 = vmatprep.subr.mxu0 0.0
        %319 = vmatpush1.msra.mxu0 0.0
        %320 = vmatprep.subr.mxu0 0.0
        %321 = vmatpush1.msra.mxu0 0.0
        %322 = vmatprep.subr.mxu0 0.0
        %323 = vmatpush1.msra.mxu0 0.0
        %324 = vmatprep.subr.mxu0 0.0
        %325 = vmatpush1.msra.mxu0 0.0
        %326 = vmatprep.subr.mxu0 0.0
        %327 = vmatpush1.msra.mxu0 0.0
        %328 = vmatprep.subr.mxu0 0.0
        %329 = vmatpush1.msra.mxu0 0.0
        %330 = vmatprep.subr.mxu0 0.0
        %331 = vmatpush1.msra.mxu0 0.0
        %332 = vmatprep.subr.mxu0 0.0
        %333 = vmatpush1.msra.mxu0 0.0
        %334 = vmatprep.subr.mxu0 0.0
        %335 = vmatpush1.msra.mxu0 0.0
        %336 = vmatprep.subr.mxu0 0.0
        %337 = vmatpush1.msra.mxu0 0.0
        %338 = vmatprep.subr.mxu0 0.0
        %339 = vmatpush1.msra.mxu0 0.0
        %340 = vmatprep.subr.mxu0 0.0
        %341 = vmatpush1.msra.mxu0 0.0
        %342 = vmatprep.subr.mxu0 0.0
        %343 = vmatpush1.msra.mxu0 0.0
        %344 = vmatprep.subr.mxu0 0.0
        %345 = vmatpush1.msra.mxu0 0.0
        %346 = vmatprep.subr.mxu0 0.0
        %347 = vmatpush1.msra.mxu0 0.0
        %348 = vmatprep.subr.mxu0 0.0
        %349 = vmatpush1.msra.mxu0 0.0
        %350 = vmatprep.subr.mxu0 0.0
        %351 = vmatpush1.msra.mxu0 0.0
        %352 = vmatprep.subr.mxu0 0.0
        %353 = vmatpush1.msra.mxu0 0.0
        %354 = vmatprep.subr.mxu0 0.0
        %355 = vmatpush1.msra.mxu0 0.0
        %356 = vmatprep.subr.mxu0 0.0
        %357 = vmatpush1.msra.mxu0 0.0
        %358 = vmatprep.subr.mxu0 0.0
        %359 = vmatpush1.msra.mxu0 0.0
        %360 = vmatprep.subr.mxu0 0.0
        %361 = vmatpush1.msra.mxu0 0.0
        %362 = vmatprep.subr.mxu0 0.0
        %363 = vmatpush1.msra.mxu0 0.0
        %364 = vmatprep.subr.mxu0 0.0
        %365 = vmatpush1.msra.mxu0 0.0
        %366 = vmatprep.subr.mxu0 0.0
        %367 = vmatpush1.msra.mxu0 0.0
        %368 = vmatprep.mubr.f32.mxu0 0.0
        %369 = vmatmul.mubr.f32.gmra.mrb[0].mxu0 %v287
        %v370 = vpop.f32.mrb[0].mxu0
        %v371 = vadd.f32 %v258, %v370
        %v372 = vpop.f32.mrb[0].mxu0
        %v373 = vadd.f32 %v258, %v372
        %374 = vmatprep.mubr.f32.mxu0 0.0
        %375 = vmatmul.mubr.f32.gmra.mrb[0].mxu0 %v290
        %v376 = vpop.f32.mrb[0].mxu0
        %v377 = vadd.f32 %v263, %v376
        %v378 = vpop.f32.mrb[0].mxu0
        %v379 = vadd.f32 %v263, %v378
        %380 = vmatprep.mubr.f32.mxu0 0.0
        %381 = vmatmul.mubr.f32.gmra.mrb[0].mxu0 %v293
        %v382 = vpop.f32.mrb[0].mxu0
        %v383 = vadd.f32 %v268, %v382
        %v384 = vpop.f32.mrb[0].mxu0
        %v385 = vadd.f32 %v268, %v384
        %386 = vmatprep.mubr.f32.mxu0 0.0
        %387 = vmatmul.mubr.f32.gmra.mrb[0].mxu0 %v296
        %v388 = vpop.f32.mrb[0].mxu0
        %v389 = vadd.f32 %v273, %v388
        %v390 = vpop.f32.mrb[0].mxu0
        %v391 = vadd.f32 %v273, %v390
        %392 = vmatprep.mubr.f32.mxu0 0.0
        %393 = vmatmul.mubr.f32.gmra.mrb[0].mxu0 %v299
        %v394 = vpop.f32.mrb[0].mxu0
        %v395 = vadd.f32 %v278, %v394
        %v396 = vpop.f32.mrb[0].mxu0
        %v397 = vadd.f32 %v278, %v396
        %398 = vmatprep.mubr.f32.mxu0 0.0
        %399 = vmatmul.mubr.f32.gmra.mrb[0].mxu0 %v302
        %v400 = vpop.f32.mrb[0].mxu0
        %v401 = vadd.f32 %v283, %v400
        %v402 = vpop.f32.mrb[0].mxu0
        %v403 = vadd.f32 %v283, %v402
        %404 = vdwg.mxu0
        %405 = vxpose.xlu0.b32.start [1/16] %v371, 128
        %406 = vxpose.xlu0.b32.cont [2/16] 0.0, 128
        %407 = vxpose.xlu0.b32.cont [3/16] 0.0, 128
        %408 = vxpose.xlu0.b32.cont [4/16] 0.0, 128
        %409 = vxpose.xlu0.b32.cont [5/16] 0.0, 128
        %410 = vxpose.xlu0.b32.cont [6/16] 0.0, 128
        %411 = vxpose.xlu0.b32.cont [7/16] 0.0, 128
        %412 = vxpose.xlu0.b32.cont [8/16] 0.0, 128
        %413 = vxpose.xlu0.b32.cont [9/16] 0.0, 128
        %414 = vxpose.xlu0.b32.cont [10/16] 0.0, 128
        %415 = vxpose.xlu0.b32.cont [11/16] 0.0, 128
        %416 = vxpose.xlu0.b32.cont [12/16] 0.0, 128
        %417 = vxpose.xlu0.b32.cont [13/16] 0.0, 128
        %418 = vxpose.xlu0.b32.cont [14/16] 0.0, 128
        %419 = vxpose.xlu0.b32.cont [15/16] 0.0, 128
        %420 = vxpose.xlu0.b32.end [16/16] 0.0, 128
        %v421 = vpop.trf.xlu0
        %v422 = vpop.trf.xlu0
        %v423 = vpop.trf.xlu0
        %v424 = vpop.trf.xlu0
        %v425 = vpop.trf.xlu0
        %v426 = vpop.trf.xlu0
        %v427 = vpop.trf.xlu0
        %v428 = vpop.trf.xlu0
        %v429 = vpop.trf.xlu0
        %v430 = vpop.trf.xlu0
        %v431 = vpop.trf.xlu0
        %v432 = vpop.trf.xlu0
        %v433 = vpop.trf.xlu0
        %v434 = vpop.trf.xlu0
        %v435 = vpop.trf.xlu0
        %v436 = vpop.trf.xlu0
        %437 = vxpose.xlu0.b32.start [1/16] %v373, 128
        %438 = vxpose.xlu0.b32.cont [2/16] 0.0, 128
        %439 = vxpose.xlu0.b32.cont [3/16] 0.0, 128
        %440 = vxpose.xlu0.b32.cont [4/16] 0.0, 128
        %441 = vxpose.xlu0.b32.cont [5/16] 0.0, 128
        %442 = vxpose.xlu0.b32.cont [6/16] 0.0, 128
        %443 = vxpose.xlu0.b32.cont [7/16] 0.0, 128
        %444 = vxpose.xlu0.b32.cont [8/16] 0.0, 128
        %445 = vxpose.xlu0.b32.cont [9/16] 0.0, 128
        %446 = vxpose.xlu0.b32.cont [10/16] 0.0, 128
        %447 = vxpose.xlu0.b32.cont [11/16] 0.0, 128
        %448 = vxpose.xlu0.b32.cont [12/16] 0.0, 128
        %449 = vxpose.xlu0.b32.cont [13/16] 0.0, 128
        %450 = vxpose.xlu0.b32.cont [14/16] 0.0, 128
        %451 = vxpose.xlu0.b32.cont [15/16] 0.0, 128
        %452 = vxpose.xlu0.b32.end [16/16] 0.0, 128
        %v453 = vpop.trf.xlu0
        %v454 = vpop.trf.xlu0
        %v455 = vpop.trf.xlu0
        %v456 = vpop.trf.xlu0
        %v457 = vpop.trf.xlu0
        %v458 = vpop.trf.xlu0
        %v459 = vpop.trf.xlu0
        %v460 = vpop.trf.xlu0
        %v461 = vpop.trf.xlu0
        %v462 = vpop.trf.xlu0
        %v463 = vpop.trf.xlu0
        %v464 = vpop.trf.xlu0
        %v465 = vpop.trf.xlu0
        %v466 = vpop.trf.xlu0
        %v467 = vpop.trf.xlu0
        %v468 = vpop.trf.xlu0
        %vm469 = vcmask 64512
        %v471 = vsel %vm469, %v421, 0
        %v474 = vsel %vm469, %v422, 0
        %v477 = vsel %vm469, %v423, 0
        %v480 = vsel %vm469, %v424, 0
        %v483 = vsel %vm469, %v425, 0
        %v486 = vsel %vm469, %v426, 0
        %v489 = vsel %vm469, %v427, 0
        %v492 = vsel %vm469, %v428, 0
        %v495 = vsel %vm469, %v429, 0
        %v498 = vsel %vm469, %v430, 0
        %v501 = vsel %vm469, %v431, 0
        %v504 = vsel %vm469, %v432, 0
        %v507 = vsel %vm469, %v433, 0
        %v510 = vsel %vm469, %v434, 0
        %v513 = vsel %vm469, %v435, 0
        %v516 = vsel %vm469, %v436, 0
        %v519 = vsel %vm469, %v453, 0
        %v522 = vsel %vm469, %v454, 0
        %v525 = vsel %vm469, %v455, 0
        %v528 = vsel %vm469, %v456, 0
        %v531 = vsel %vm469, %v457, 0
        %v534 = vsel %vm469, %v458, 0
        %v537 = vsel %vm469, %v459, 0
        %v540 = vsel %vm469, %v460, 0
        %v543 = vsel %vm469, %v461, 0
        %v546 = vsel %vm469, %v462, 0
        %v549 = vsel %vm469, %v463, 0
        %v552 = vsel %vm469, %v464, 0
        %v555 = vsel %vm469, %v465, 0
        %v558 = vsel %vm469, %v466, 0
        %v561 = vsel %vm469, %v467, 0
        %v564 = vsel %vm469, %v468, 0
        %566 = vmatprep.subr.mxu0 %v379
        %567 = vmatpush1.msra.mxu0 %v377
        %568 = vmatprep.subr.mxu0 0.0
        %569 = vmatpush1.msra.mxu0 0.0
        %570 = vmatprep.subr.mxu0 0.0
        %571 = vmatpush1.msra.mxu0 0.0
        %572 = vmatprep.subr.mxu0 0.0
        %573 = vmatpush1.msra.mxu0 0.0
        %574 = vmatprep.subr.mxu0 0.0
        %575 = vmatpush1.msra.mxu0 0.0
        %576 = vmatprep.subr.mxu0 0.0
        %577 = vmatpush1.msra.mxu0 0.0
        %578 = vmatprep.subr.mxu0 0.0
        %579 = vmatpush1.msra.mxu0 0.0
        %580 = vmatprep.subr.mxu0 0.0
        %581 = vmatpush1.msra.mxu0 0.0
        %582 = vmatprep.subr.mxu0 0.0
        %583 = vmatpush1.msra.mxu0 0.0
        %584 = vmatprep.subr.mxu0 0.0
        %585 = vmatpush1.msra.mxu0 0.0
        %586 = vmatprep.subr.mxu0 0.0
        %587 = vmatpush1.msra.mxu0 0.0
        %588 = vmatprep.subr.mxu0 0.0
        %589 = vmatpush1.msra.mxu0 0.0
        %590 = vmatprep.subr.mxu0 0.0
        %591 = vmatpush1.msra.mxu0 0.0
        %592 = vmatprep.subr.mxu0 0.0
        %593 = vmatpush1.msra.mxu0 0.0
        %594 = vmatprep.subr.mxu0 0.0
        %595 = vmatpush1.msra.mxu0 0.0
        %596 = vmatprep.subr.mxu0 0.0
        %597 = vmatpush1.msra.mxu0 0.0
        %598 = vmatprep.subr.mxu0 0.0
        %599 = vmatpush1.msra.mxu0 0.0
        %600 = vmatprep.subr.mxu0 0.0
        %601 = vmatpush1.msra.mxu0 0.0
        %602 = vmatprep.subr.mxu0 0.0
        %603 = vmatpush1.msra.mxu0 0.0
        %604 = vmatprep.subr.mxu0 0.0
        %605 = vmatpush1.msra.mxu0 0.0
        %606 = vmatprep.subr.mxu0 0.0
        %607 = vmatpush1.msra.mxu0 0.0
        %608 = vmatprep.subr.mxu0 0.0
        %609 = vmatpush1.msra.mxu0 0.0
        %610 = vmatprep.subr.mxu0 0.0
        %611 = vmatpush1.msra.mxu0 0.0
        %612 = vmatprep.subr.mxu0 0.0
        %613 = vmatpush1.msra.mxu0 0.0
        %614 = vmatprep.subr.mxu0 0.0
        %615 = vmatpush1.msra.mxu0 0.0
        %616 = vmatprep.subr.mxu0 0.0
        %617 = vmatpush1.msra.mxu0 0.0
        %618 = vmatprep.subr.mxu0 0.0
        %619 = vmatpush1.msra.mxu0 0.0
        %620 = vmatprep.subr.mxu0 0.0
        %621 = vmatpush1.msra.mxu0 0.0
        %622 = vmatprep.subr.mxu0 0.0
        %623 = vmatpush1.msra.mxu0 0.0
        %624 = vmatprep.subr.mxu0 0.0
        %625 = vmatpush1.msra.mxu0 0.0
        %626 = vmatprep.subr.mxu0 0.0
        %627 = vmatpush1.msra.mxu0 0.0
        %628 = vmatprep.subr.mxu0 0.0
        %629 = vmatpush1.msra.mxu0 0.0
        %630 = vmatprep.mubr.f32.mxu0 0.0
        %631 = vmatmul.mubr.f32.gmra.mrb[0].mxu0 %v471
        %v632 = vpop.f32.mrb[0].mxu0
        %v633 = vadd.f32 0.0, %v632
        %v634 = vpop.f32.mrb[0].mxu0
        %v635 = vadd.f32 0.0, %v634
        %636 = vmatprep.mubr.f32.mxu0 0.0
        %637 = vmatmul.mubr.f32.gmra.mrb[0].mxu0 %v474
        %v638 = vpop.f32.mrb[0].mxu0
        %v639 = vadd.f32 0.0, %v638
        %v640 = vpop.f32.mrb[0].mxu0
        %v641 = vadd.f32 0.0, %v640
        %642 = vmatprep.mubr.f32.mxu0 0.0
        %643 = vmatmul.mubr.f32.gmra.mrb[0].mxu0 %v477
        %v644 = vpop.f32.mrb[0].mxu0
        %v645 = vadd.f32 0.0, %v644
        %v646 = vpop.f32.mrb[0].mxu0
        %v647 = vadd.f32 0.0, %v646
        %648 = vmatprep.mubr.f32.mxu0 0.0
        %649 = vmatmul.mubr.f32.gmra.mrb[0].mxu0 %v480
        %v650 = vpop.f32.mrb[0].mxu0
        %v651 = vadd.f32 0.0, %v650
        %v652 = vpop.f32.mrb[0].mxu0
        %v653 = vadd.f32 0.0, %v652
        %654 = vmatprep.mubr.f32.mxu0 0.0
        %655 = vmatmul.mubr.f32.gmra.mrb[0].mxu0 %v483
        %v656 = vpop.f32.mrb[0].mxu0
        %v657 = vadd.f32 0.0, %v656
        %v658 = vpop.f32.mrb[0].mxu0
        %v659 = vadd.f32 0.0, %v658
        %660 = vmatprep.mubr.f32.mxu0 0.0
        %661 = vmatmul.mubr.f32.gmra.mrb[0].mxu0 %v486
        %v662 = vpop.f32.mrb[0].mxu0
        %v663 = vadd.f32 0.0, %v662
        %v664 = vpop.f32.mrb[0].mxu0
        %v665 = vadd.f32 0.0, %v664
        %666 = vmatprep.mubr.f32.mxu0 0.0
        %667 = vmatmul.mubr.f32.gmra.mrb[0].mxu0 %v489
        %v668 = vpop.f32.mrb[0].mxu0
        %v669 = vadd.f32 0.0, %v668
        %v670 = vpop.f32.mrb[0].mxu0
        %v671 = vadd.f32 0.0, %v670
        %672 = vmatprep.mubr.f32.mxu0 0.0
        %673 = vmatmul.mubr.f32.gmra.mrb[0].mxu0 %v492
        %v674 = vpop.f32.mrb[0].mxu0
        %v675 = vadd.f32 0.0, %v674
        %v676 = vpop.f32.mrb[0].mxu0
        %v677 = vadd.f32 0.0, %v676
        %678 = vmatprep.mubr.f32.mxu0 0.0
        %679 = vmatmul.mubr.f32.gmra.mrb[0].mxu0 %v495
        %v680 = vpop.f32.mrb[0].mxu0
        %v681 = vadd.f32 0.0, %v680
        %v682 = vpop.f32.mrb[0].mxu0
        %v683 = vadd.f32 0.0, %v682
        %684 = vmatprep.mubr.f32.mxu0 0.0
        %685 = vmatmul.mubr.f32.gmra.mrb[0].mxu0 %v498
        %v686 = vpop.f32.mrb[0].mxu0
        %v687 = vadd.f32 0.0, %v686
        %v688 = vpop.f32.mrb[0].mxu0
        %v689 = vadd.f32 0.0, %v688
        %690 = vmatprep.mubr.f32.mxu0 0.0
        %691 = vmatmul.mubr.f32.gmra.mrb[0].mxu0 %v501
        %v692 = vpop.f32.mrb[0].mxu0
        %v693 = vadd.f32 0.0, %v692
        %v694 = vpop.f32.mrb[0].mxu0
        %v695 = vadd.f32 0.0, %v694
        %696 = vmatprep.mubr.f32.mxu0 0.0
        %697 = vmatmul.mubr.f32.gmra.mrb[0].mxu0 %v504
        %v698 = vpop.f32.mrb[0].mxu0
        %v699 = vadd.f32 0.0, %v698
        %v700 = vpop.f32.mrb[0].mxu0
        %v701 = vadd.f32 0.0, %v700
        %702 = vmatprep.mubr.f32.mxu0 0.0
        %703 = vmatmul.mubr.f32.gmra.mrb[0].mxu0 %v507
        %v704 = vpop.f32.mrb[0].mxu0
        %v705 = vadd.f32 0.0, %v704
        %v706 = vpop.f32.mrb[0].mxu0
        %v707 = vadd.f32 0.0, %v706
        %708 = vmatprep.mubr.f32.mxu0 0.0
        %709 = vmatmul.mubr.f32.gmra.mrb[0].mxu0 %v510
        %v710 = vpop.f32.mrb[0].mxu0
        %v711 = vadd.f32 0.0, %v710
        %v712 = vpop.f32.mrb[0].mxu0
        %v713 = vadd.f32 0.0, %v712
        %714 = vmatprep.mubr.f32.mxu0 0.0
        %715 = vmatmul.mubr.f32.gmra.mrb[0].mxu0 %v513
        %v716 = vpop.f32.mrb[0].mxu0
        %v717 = vadd.f32 0.0, %v716
        %v718 = vpop.f32.mrb[0].mxu0
        %v719 = vadd.f32 0.0, %v718
        %720 = vmatprep.mubr.f32.mxu0 0.0
        %721 = vmatmul.mubr.f32.gmra.mrb[0].mxu0 %v516
        %v722 = vpop.f32.mrb[0].mxu0
        %v723 = vadd.f32 0.0, %v722
        %v724 = vpop.f32.mrb[0].mxu0
        %v725 = vadd.f32 0.0, %v724
        %726 = vmatprep.mubr.f32.mxu0 0.0
        %727 = vmatmul.mubr.f32.gmra.mrb[0].mxu0 %v519
        %v728 = vpop.f32.mrb[0].mxu0
        %v729 = vadd.f32 0.0, %v728
        %v730 = vpop.f32.mrb[0].mxu0
        %v731 = vadd.f32 0.0, %v730
        %732 = vmatprep.mubr.f32.mxu0 0.0
        %733 = vmatmul.mubr.f32.gmra.mrb[0].mxu0 %v522
        %v734 = vpop.f32.mrb[0].mxu0
        %v735 = vadd.f32 0.0, %v734
        %v736 = vpop.f32.mrb[0].mxu0
        %v737 = vadd.f32 0.0, %v736
        %738 = vmatprep.mubr.f32.mxu0 0.0
        %739 = vmatmul.mubr.f32.gmra.mrb[0].mxu0 %v525
        %v740 = vpop.f32.mrb[0].mxu0
        %v741 = vadd.f32 0.0, %v740
        %v742 = vpop.f32.mrb[0].mxu0
        %v743 = vadd.f32 0.0, %v742
        %744 = vmatprep.mubr.f32.mxu0 0.0
        %745 = vmatmul.mubr.f32.gmra.mrb[0].mxu0 %v528
        %v746 = vpop.f32.mrb[0].mxu0
        %v747 = vadd.f32 0.0, %v746
        %v748 = vpop.f32.mrb[0].mxu0
        %v749 = vadd.f32 0.0, %v748
        %750 = vmatprep.mubr.f32.mxu0 0.0
        %751 = vmatmul.mubr.f32.gmra.mrb[0].mxu0 %v531
        %v752 = vpop.f32.mrb[0].mxu0
        %v753 = vadd.f32 0.0, %v752
        %v754 = vpop.f32.mrb[0].mxu0
        %v755 = vadd.f32 0.0, %v754
        %756 = vmatprep.mubr.f32.mxu0 0.0
        %757 = vmatmul.mubr.f32.gmra.mrb[0].mxu0 %v534
        %v758 = vpop.f32.mrb[0].mxu0
        %v759 = vadd.f32 0.0, %v758
        %v760 = vpop.f32.mrb[0].mxu0
        %v761 = vadd.f32 0.0, %v760
        %762 = vmatprep.mubr.f32.mxu0 0.0
        %763 = vmatmul.mubr.f32.gmra.mrb[0].mxu0 %v537
        %v764 = vpop.f32.mrb[0].mxu0
        %v765 = vadd.f32 0.0, %v764
        %v766 = vpop.f32.mrb[0].mxu0
        %v767 = vadd.f32 0.0, %v766
        %768 = vmatprep.mubr.f32.mxu0 0.0
        %769 = vmatmul.mubr.f32.gmra.mrb[0].mxu0 %v540
        %v770 = vpop.f32.mrb[0].mxu0
        %v771 = vadd.f32 0.0, %v770
        %v772 = vpop.f32.mrb[0].mxu0
        %v773 = vadd.f32 0.0, %v772
        %774 = vmatprep.mubr.f32.mxu0 0.0
        %775 = vmatmul.mubr.f32.gmra.mrb[0].mxu0 %v543
        %v776 = vpop.f32.mrb[0].mxu0
        %v777 = vadd.f32 0.0, %v776
        %v778 = vpop.f32.mrb[0].mxu0
        %v779 = vadd.f32 0.0, %v778
        %780 = vmatprep.mubr.f32.mxu0 0.0
        %781 = vmatmul.mubr.f32.gmra.mrb[0].mxu0 %v546
        %v782 = vpop.f32.mrb[0].mxu0
        %v783 = vadd.f32 0.0, %v782
        %v784 = vpop.f32.mrb[0].mxu0
        %v785 = vadd.f32 0.0, %v784
        %786 = vmatprep.mubr.f32.mxu0 0.0
        %787 = vmatmul.mubr.f32.gmra.mrb[0].mxu0 %v549
        %v788 = vpop.f32.mrb[0].mxu0
        %v789 = vadd.f32 0.0, %v788
        %v790 = vpop.f32.mrb[0].mxu0
        %v791 = vadd.f32 0.0, %v790
        %792 = vmatprep.mubr.f32.mxu0 0.0
        %793 = vmatmul.mubr.f32.gmra.mrb[0].mxu0 %v552
        %v794 = vpop.f32.mrb[0].mxu0
        %v795 = vadd.f32 0.0, %v794
        %v796 = vpop.f32.mrb[0].mxu0
        %v797 = vadd.f32 0.0, %v796
        %798 = vmatprep.mubr.f32.mxu0 0.0
        %799 = vmatmul.mubr.f32.gmra.mrb[0].mxu0 %v555
        %v800 = vpop.f32.mrb[0].mxu0
        %v801 = vadd.f32 0.0, %v800
        %v802 = vpop.f32.mrb[0].mxu0
        %v803 = vadd.f32 0.0, %v802
        %804 = vmatprep.mubr.f32.mxu0 0.0
        %805 = vmatmul.mubr.f32.gmra.mrb[0].mxu0 %v558
        %v806 = vpop.f32.mrb[0].mxu0
        %v807 = vadd.f32 0.0, %v806
        %v808 = vpop.f32.mrb[0].mxu0
        %v809 = vadd.f32 0.0, %v808
        %810 = vmatprep.mubr.f32.mxu0 0.0
        %811 = vmatmul.mubr.f32.gmra.mrb[0].mxu0 %v561
        %v812 = vpop.f32.mrb[0].mxu0
        %v813 = vadd.f32 0.0, %v812
        %v814 = vpop.f32.mrb[0].mxu0
        %v815 = vadd.f32 0.0, %v814
        %816 = vmatprep.mubr.f32.mxu0 0.0
        %817 = vmatmul.mubr.f32.gmra.mrb[0].mxu0 %v564
        %v818 = vpop.f32.mrb[0].mxu0
        %v819 = vadd.f32 0.0, %v818
        %v820 = vpop.f32.mrb[0].mxu0
        %v821 = vadd.f32 0.0, %v820
        %822 = vdwg.mxu0
        %v823 = vmax.f32 %v633, %v635
        %824 = vmax.xlane.f32.xlu0 %v823
        %v825 = vpop.xlane.xlu0 %824
        %v826 = vmax.f32 %v639, %v641
        %827 = vmax.xlane.f32.xlu0 %v826
        %v828 = vpop.xlane.xlu0 %827
        %v829 = vmax.f32 %v645, %v647
        %830 = vmax.xlane.f32.xlu0 %v829
        %v831 = vpop.xlane.xlu0 %830
        %v832 = vmax.f32 %v651, %v653
        %833 = vmax.xlane.f32.xlu0 %v832
        %v834 = vpop.xlane.xlu0 %833
        %v835 = vmax.f32 %v657, %v659
        %836 = vmax.xlane.f32.xlu0 %v835
        %v837 = vpop.xlane.xlu0 %836
        %v838 = vmax.f32 %v663, %v665
        %839 = vmax.xlane.f32.xlu0 %v838
        %v840 = vpop.xlane.xlu0 %839
        %v841 = vmax.f32 %v669, %v671
        %842 = vmax.xlane.f32.xlu0 %v841
        %v843 = vpop.xlane.xlu0 %842
        %v844 = vmax.f32 %v675, %v677
        %845 = vmax.xlane.f32.xlu0 %v844
        %v846 = vpop.xlane.xlu0 %845
        %v847 = vmax.f32 %v681, %v683
        %848 = vmax.xlane.f32.xlu0 %v847
        %v849 = vpop.xlane.xlu0 %848
        %v850 = vmax.f32 %v687, %v689
        %851 = vmax.xlane.f32.xlu0 %v850
        %v852 = vpop.xlane.xlu0 %851
        %v853 = vmax.f32 %v693, %v695
        %854 = vmax.xlane.f32.xlu0 %v853
        %v855 = vpop.xlane.xlu0 %854
        %v856 = vmax.f32 %v699, %v701
        %857 = vmax.xlane.f32.xlu0 %v856
        %v858 = vpop.xlane.xlu0 %857
        %v859 = vmax.f32 %v705, %v707
        %860 = vmax.xlane.f32.xlu0 %v859
        %v861 = vpop.xlane.xlu0 %860
        %v862 = vmax.f32 %v711, %v713
        %863 = vmax.xlane.f32.xlu0 %v862
        %v864 = vpop.xlane.xlu0 %863
        %v865 = vmax.f32 %v717, %v719
        %866 = vmax.xlane.f32.xlu0 %v865
        %v867 = vpop.xlane.xlu0 %866
        %v868 = vmax.f32 %v723, %v725
        %869 = vmax.xlane.f32.xlu0 %v868
        %v870 = vpop.xlane.xlu0 %869
        %v871 = vmax.f32 %v729, %v731
        %872 = vmax.xlane.f32.xlu0 %v871
        %v873 = vpop.xlane.xlu0 %872
        %v874 = vmax.f32 %v735, %v737
        %875 = vmax.xlane.f32.xlu0 %v874
        %v876 = vpop.xlane.xlu0 %875
        %v877 = vmax.f32 %v741, %v743
        %878 = vmax.xlane.f32.xlu0 %v877
        %v879 = vpop.xlane.xlu0 %878
        %v880 = vmax.f32 %v747, %v749
        %881 = vmax.xlane.f32.xlu0 %v880
        %v882 = vpop.xlane.xlu0 %881
        %v883 = vmax.f32 %v753, %v755
        %884 = vmax.xlane.f32.xlu0 %v883
        %v885 = vpop.xlane.xlu0 %884
        %v886 = vmax.f32 %v759, %v761
        %887 = vmax.xlane.f32.xlu0 %v886
        %v888 = vpop.xlane.xlu0 %887
        %v889 = vmax.f32 %v765, %v767
        %890 = vmax.xlane.f32.xlu0 %v889
        %v891 = vpop.xlane.xlu0 %890
        %v892 = vmax.f32 %v771, %v773
        %893 = vmax.xlane.f32.xlu0 %v892
        %v894 = vpop.xlane.xlu0 %893
        %v895 = vmax.f32 %v777, %v779
        %896 = vmax.xlane.f32.xlu0 %v895
        %v897 = vpop.xlane.xlu0 %896
        %v898 = vmax.f32 %v783, %v785
        %899 = vmax.xlane.f32.xlu0 %v898
        %v900 = vpop.xlane.xlu0 %899
        %v901 = vmax.f32 %v789, %v791
        %902 = vmax.xlane.f32.xlu0 %v901
        %v903 = vpop.xlane.xlu0 %902
        %v904 = vmax.f32 %v795, %v797
        %905 = vmax.xlane.f32.xlu0 %v904
        %v906 = vpop.xlane.xlu0 %905
        %v907 = vmax.f32 %v801, %v803
        %908 = vmax.xlane.f32.xlu0 %v907
        %v909 = vpop.xlane.xlu0 %908
        %v910 = vmax.f32 %v807, %v809
        %911 = vmax.xlane.f32.xlu0 %v910
        %v912 = vpop.xlane.xlu0 %911
        %v913 = vmax.f32 %v813, %v815
        %914 = vmax.xlane.f32.xlu0 %v913
        %v915 = vpop.xlane.xlu0 %914
        %v916 = vmax.f32 %v819, %v821
        %917 = vmax.xlane.f32.xlu0 %v916
        %v918 = vpop.xlane.xlu0 %917
        %v919 = vsub.f32 %v633, %v825
        %v920 = vsub.f32 %v635, %v825
        %v921 = vsub.f32 %v639, %v828
        %v922 = vsub.f32 %v641, %v828
        %v923 = vsub.f32 %v645, %v831
        %v924 = vsub.f32 %v647, %v831
        %v925 = vsub.f32 %v651, %v834
        %v926 = vsub.f32 %v653, %v834
        %v927 = vsub.f32 %v657, %v837
        %v928 = vsub.f32 %v659, %v837
        %v929 = vsub.f32 %v663, %v840
        %v930 = vsub.f32 %v665, %v840
        %v931 = vsub.f32 %v669, %v843
        %v932 = vsub.f32 %v671, %v843
        %v933 = vsub.f32 %v675, %v846
        %v934 = vsub.f32 %v677, %v846
        %v935 = vsub.f32 %v681, %v849
        %v936 = vsub.f32 %v683, %v849
        %v937 = vsub.f32 %v687, %v852
        %v938 = vsub.f32 %v689, %v852
        %v939 = vsub.f32 %v693, %v855
        %v940 = vsub.f32 %v695, %v855
        %v941 = vsub.f32 %v699, %v858
        %v942 = vsub.f32 %v701, %v858
        %v943 = vsub.f32 %v705, %v861
        %v944 = vsub.f32 %v707, %v861
        %v945 = vsub.f32 %v711, %v864
        %v946 = vsub.f32 %v713, %v864
        %v947 = vsub.f32 %v717, %v867
        %v948 = vsub.f32 %v719, %v867
        %v949 = vsub.f32 %v723, %v870
        %v950 = vsub.f32 %v725, %v870
        %v951 = vsub.f32 %v729, %v873
        %v952 = vsub.f32 %v731, %v873
        %v953 = vsub.f32 %v735, %v876
        %v954 = vsub.f32 %v737, %v876
        %v955 = vsub.f32 %v741, %v879
        %v956 = vsub.f32 %v743, %v879
        %v957 = vsub.f32 %v747, %v882
        %v958 = vsub.f32 %v749, %v882
        %v959 = vsub.f32 %v753, %v885
        %v960 = vsub.f32 %v755, %v885
        %v961 = vsub.f32 %v759, %v888
        %v962 = vsub.f32 %v761, %v888
        %v963 = vsub.f32 %v765, %v891
        %v964 = vsub.f32 %v767, %v891
        %v965 = vsub.f32 %v771, %v894
        %v966 = vsub.f32 %v773, %v894
        %v967 = vsub.f32 %v777, %v897
        %v968 = vsub.f32 %v779, %v897
        %v969 = vsub.f32 %v783, %v900
        %v970 = vsub.f32 %v785, %v900
        %v971 = vsub.f32 %v789, %v903
        %v972 = vsub.f32 %v791, %v903
        %v973 = vsub.f32 %v795, %v906
        %v974 = vsub.f32 %v797, %v906
        %v975 = vsub.f32 %v801, %v909
        %v976 = vsub.f32 %v803, %v909
        %v977 = vsub.f32 %v807, %v912
        %v978 = vsub.f32 %v809, %v912
        %v979 = vsub.f32 %v813, %v915
        %v980 = vsub.f32 %v815, %v915
        %v981 = vsub.f32 %v819, %v918
        %v982 = vsub.f32 %v821, %v918
        %v983 = vmul.f32 %v919, 1.442695
        %v984 = vpow.pop %v983
        %v985 = vmul.f32 %v920, 1.442695
        %v986 = vpow.pop %v985
        %v987 = vmul.f32 %v921, 1.442695
        %v988 = vpow.pop %v987
        %v989 = vmul.f32 %v922, 1.442695
        %v990 = vpow.pop %v989
        %v991 = vmul.f32 %v923, 1.442695
        %v992 = vpow.pop %v991
        %v993 = vmul.f32 %v924, 1.442695
        %v994 = vpow.pop %v993
        %v995 = vmul.f32 %v925, 1.442695
        %v996 = vpow.pop %v995
        %v997 = vmul.f32 %v926, 1.442695
        %v998 = vpow.pop %v997
        %v999 = vmul.f32 %v927, 1.442695
        %v1000 = vpow.pop %v999
        %v1001 = vmul.f32 %v928, 1.442695
        %v1002 = vpow.pop %v1001
        %v1003 = vmul.f32 %v929, 1.442695
        %v1004 = vpow.pop %v1003
        %v1005 = vmul.f32 %v930, 1.442695
        %v1006 = vpow.pop %v1005
        %v1007 = vmul.f32 %v931, 1.442695
        %v1008 = vpow.pop %v1007
        %v1009 = vmul.f32 %v932, 1.442695
        %v1010 = vpow.pop %v1009
        %v1011 = vmul.f32 %v933, 1.442695
        %v1012 = vpow.pop %v1011
        %v1013 = vmul.f32 %v934, 1.442695
        %v1014 = vpow.pop %v1013
        %v1015 = vmul.f32 %v935, 1.442695
        %v1016 = vpow.pop %v1015
        %v1017 = vmul.f32 %v936, 1.442695
        %v1018 = vpow.pop %v1017
        %v1019 = vmul.f32 %v937, 1.442695
        %v1020 = vpow.pop %v1019
        %v1021 = vmul.f32 %v938, 1.442695
        %v1022 = vpow.pop %v1021
        %v1023 = vmul.f32 %v939, 1.442695
        %v1024 = vpow.pop %v1023
        %v1025 = vmul.f32 %v940, 1.442695
        %v1026 = vpow.pop %v1025
        %v1027 = vmul.f32 %v941, 1.442695
        %v1028 = vpow.pop %v1027
        %v1029 = vmul.f32 %v942, 1.442695
        %v1030 = vpow.pop %v1029
        %v1031 = vmul.f32 %v943, 1.442695
        %v1032 = vpow.pop %v1031
        %v1033 = vmul.f32 %v944, 1.442695
        %v1034 = vpow.pop %v1033
        %v1035 = vmul.f32 %v945, 1.442695
        %v1036 = vpow.pop %v1035
        %v1037 = vmul.f32 %v946, 1.442695
        %v1038 = vpow.pop %v1037
        %v1039 = vmul.f32 %v947, 1.442695
        %v1040 = vpow.pop %v1039
        %v1041 = vmul.f32 %v948, 1.442695
        %v1042 = vpow.pop %v1041
        %v1043 = vmul.f32 %v949, 1.442695
        %v1044 = vpow.pop %v1043
        %v1045 = vmul.f32 %v950, 1.442695
        %v1046 = vpow.pop %v1045
        %v1047 = vmul.f32 %v951, 1.442695
        %v1048 = vpow.pop %v1047
        %v1049 = vmul.f32 %v952, 1.442695
        %v1050 = vpow.pop %v1049
        %v1051 = vmul.f32 %v953, 1.442695
        %v1052 = vpow.pop %v1051
        %v1053 = vmul.f32 %v954, 1.442695
        %v1054 = vpow.pop %v1053
        %v1055 = vmul.f32 %v955, 1.442695
        %v1056 = vpow.pop %v1055
        %v1057 = vmul.f32 %v956, 1.442695
        %v1058 = vpow.pop %v1057
        %v1059 = vmul.f32 %v957, 1.442695
        %v1060 = vpow.pop %v1059
        %v1061 = vmul.f32 %v958, 1.442695
        %v1062 = vpow.pop %v1061
        %v1063 = vmul.f32 %v959, 1.442695
        %v1064 = vpow.pop %v1063
        %v1065 = vmul.f32 %v960, 1.442695
        %v1066 = vpow.pop %v1065
        %v1067 = vmul.f32 %v961, 1.442695
        %v1068 = vpow.pop %v1067
        %v1069 = vmul.f32 %v962, 1.442695
        %v1070 = vpow.pop %v1069
        %v1071 = vmul.f32 %v963, 1.442695
        %v1072 = vpow.pop %v1071
        %v1073 = vmul.f32 %v964, 1.442695
        %v1074 = vpow.pop %v1073
        %v1075 = vmul.f32 %v965, 1.442695
        %v1076 = vpow.pop %v1075
        %v1077 = vmul.f32 %v966, 1.442695
        %v1078 = vpow.pop %v1077
        %v1079 = vmul.f32 %v967, 1.442695
        %v1080 = vpow.pop %v1079
        %v1081 = vmul.f32 %v968, 1.442695
        %v1082 = vpow.pop %v1081
        %v1083 = vmul.f32 %v969, 1.442695
        %v1084 = vpow.pop %v1083
        %v1085 = vmul.f32 %v970, 1.442695
        %v1086 = vpow.pop %v1085
        %v1087 = vmul.f32 %v971, 1.442695
        %v1088 = vpow.pop %v1087
        %v1089 = vmul.f32 %v972, 1.442695
        %v1090 = vpow.pop %v1089
        %v1091 = vmul.f32 %v973, 1.442695
        %v1092 = vpow.pop %v1091
        %v1093 = vmul.f32 %v974, 1.442695
        %v1094 = vpow.pop %v1093
        %v1095 = vmul.f32 %v975, 1.442695
        %v1096 = vpow.pop %v1095
        %v1097 = vmul.f32 %v976, 1.442695
        %v1098 = vpow.pop %v1097
        %v1099 = vmul.f32 %v977, 1.442695
        %v1100 = vpow.pop %v1099
        %v1101 = vmul.f32 %v978, 1.442695
        %v1102 = vpow.pop %v1101
        %v1103 = vmul.f32 %v979, 1.442695
        %v1104 = vpow.pop %v1103
        %v1105 = vmul.f32 %v980, 1.442695
        %v1106 = vpow.pop %v1105
        %v1107 = vmul.f32 %v981, 1.442695
        %v1108 = vpow.pop %v1107
        %v1109 = vmul.f32 %v982, 1.442695
        %v1110 = vpow.pop %v1109
        %v1111 = vadd.f32 %v984, %v986
        %1112 = vadd.xlane.f32.xlu0 %v1111
        %v1113 = vpop.xlane.xlu0 %1112
        %v1114 = vadd.f32 %v988, %v990
        %1115 = vadd.xlane.f32.xlu0 %v1114
        %v1116 = vpop.xlane.xlu0 %1115
        %v1117 = vadd.f32 %v992, %v994
        %1118 = vadd.xlane.f32.xlu0 %v1117
        %v1119 = vpop.xlane.xlu0 %1118
        %v1120 = vadd.f32 %v996, %v998
        %1121 = vadd.xlane.f32.xlu0 %v1120
        %v1122 = vpop.xlane.xlu0 %1121
        %v1123 = vadd.f32 %v1000, %v1002
        %1124 = vadd.xlane.f32.xlu0 %v1123
        %v1125 = vpop.xlane.xlu0 %1124
        %v1126 = vadd.f32 %v1004, %v1006
        %1127 = vadd.xlane.f32.xlu0 %v1126
        %v1128 = vpop.xlane.xlu0 %1127
        %v1129 = vadd.f32 %v1008, %v1010
        %1130 = vadd.xlane.f32.xlu0 %v1129
        %v1131 = vpop.xlane.xlu0 %1130
        %v1132 = vadd.f32 %v1012, %v1014
        %1133 = vadd.xlane.f32.xlu0 %v1132
        %v1134 = vpop.xlane.xlu0 %1133
        %v1135 = vadd.f32 %v1016, %v1018
        %1136 = vadd.xlane.f32.xlu0 %v1135
        %v1137 = vpop.xlane.xlu0 %1136
        %v1138 = vadd.f32 %v1020, %v1022
        %1139 = vadd.xlane.f32.xlu0 %v1138
        %v1140 = vpop.xlane.xlu0 %1139
        %v1141 = vadd.f32 %v1024, %v1026
        %1142 = vadd.xlane.f32.xlu0 %v1141
        %v1143 = vpop.xlane.xlu0 %1142
        %v1144 = vadd.f32 %v1028, %v1030
        %1145 = vadd.xlane.f32.xlu0 %v1144
        %v1146 = vpop.xlane.xlu0 %1145
        %v1147 = vadd.f32 %v1032, %v1034
        %1148 = vadd.xlane.f32.xlu0 %v1147
        %v1149 = vpop.xlane.xlu0 %1148
        %v1150 = vadd.f32 %v1036, %v1038
        %1151 = vadd.xlane.f32.xlu0 %v1150
        %v1152 = vpop.xlane.xlu0 %1151
        %v1153 = vadd.f32 %v1040, %v1042
        %1154 = vadd.xlane.f32.xlu0 %v1153
        %v1155 = vpop.xlane.xlu0 %1154
        %v1156 = vadd.f32 %v1044, %v1046
        %1157 = vadd.xlane.f32.xlu0 %v1156
        %v1158 = vpop.xlane.xlu0 %1157
        %v1159 = vadd.f32 %v1048, %v1050
        %1160 = vadd.xlane.f32.xlu0 %v1159
        %v1161 = vpop.xlane.xlu0 %1160
        %v1162 = vadd.f32 %v1052, %v1054
        %1163 = vadd.xlane.f32.xlu0 %v1162
        %v1164 = vpop.xlane.xlu0 %1163
        %v1165 = vadd.f32 %v1056, %v1058
        %1166 = vadd.xlane.f32.xlu0 %v1165
        %v1167 = vpop.xlane.xlu0 %1166
        %v1168 = vadd.f32 %v1060, %v1062
        %1169 = vadd.xlane.f32.xlu0 %v1168
        %v1170 = vpop.xlane.xlu0 %1169
        %v1171 = vadd.f32 %v1064, %v1066
        %1172 = vadd.xlane.f32.xlu0 %v1171
        %v1173 = vpop.xlane.xlu0 %1172
        %v1174 = vadd.f32 %v1068, %v1070
        %1175 = vadd.xlane.f32.xlu0 %v1174
        %v1176 = vpop.xlane.xlu0 %1175
        %v1177 = vadd.f32 %v1072, %v1074
        %1178 = vadd.xlane.f32.xlu0 %v1177
        %v1179 = vpop.xlane.xlu0 %1178
        %v1180 = vadd.f32 %v1076, %v1078
        %1181 = vadd.xlane.f32.xlu0 %v1180
        %v1182 = vpop.xlane.xlu0 %1181
        %v1183 = vadd.f32 %v1080, %v1082
        %1184 = vadd.xlane.f32.xlu0 %v1183
        %v1185 = vpop.xlane.xlu0 %1184
        %v1186 = vadd.f32 %v1084, %v1086
        %1187 = vadd.xlane.f32.xlu0 %v1186
        %v1188 = vpop.xlane.xlu0 %1187
        %v1189 = vadd.f32 %v1088, %v1090
        %1190 = vadd.xlane.f32.xlu0 %v1189
        %v1191 = vpop.xlane.xlu0 %1190
        %v1192 = vadd.f32 %v1092, %v1094
        %1193 = vadd.xlane.f32.xlu0 %v1192
        %v1194 = vpop.xlane.xlu0 %1193
        %v1195 = vadd.f32 %v1096, %v1098
        %1196 = vadd.xlane.f32.xlu0 %v1195
        %v1197 = vpop.xlane.xlu0 %1196
        %v1198 = vadd.f32 %v1100, %v1102
        %1199 = vadd.xlane.f32.xlu0 %v1198
        %v1200 = vpop.xlane.xlu0 %1199
        %v1201 = vadd.f32 %v1104, %v1106
        %1202 = vadd.xlane.f32.xlu0 %v1201
        %v1203 = vpop.xlane.xlu0 %1202
        %v1204 = vadd.f32 %v1108, %v1110
        %1205 = vadd.xlane.f32.xlu0 %v1204
        %v1206 = vpop.xlane.xlu0 %1205
        %v1207 = vrcp.pop %v1113
        %v1208 = vmul.f32 %v984, %v1207
        %v1209 = vmul.f32 %v986, %v1207
        %v1210 = vrcp.pop %v1116
        %v1211 = vmul.f32 %v988, %v1210
        %v1212 = vmul.f32 %v990, %v1210
        %v1213 = vrcp.pop %v1119
        %v1214 = vmul.f32 %v992, %v1213
        %v1215 = vmul.f32 %v994, %v1213
        %v1216 = vrcp.pop %v1122
        %v1217 = vmul.f32 %v996, %v1216
        %v1218 = vmul.f32 %v998, %v1216
        %v1219 = vrcp.pop %v1125
        %v1220 = vmul.f32 %v1000, %v1219
        %v1221 = vmul.f32 %v1002, %v1219
        %v1222 = vrcp.pop %v1128
        %v1223 = vmul.f32 %v1004, %v1222
        %v1224 = vmul.f32 %v1006, %v1222
        %v1225 = vrcp.pop %v1131
        %v1226 = vmul.f32 %v1008, %v1225
        %v1227 = vmul.f32 %v1010, %v1225
        %v1228 = vrcp.pop %v1134
        %v1229 = vmul.f32 %v1012, %v1228
        %v1230 = vmul.f32 %v1014, %v1228
        %v1231 = vrcp.pop %v1137
        %v1232 = vmul.f32 %v1016, %v1231
        %v1233 = vmul.f32 %v1018, %v1231
        %v1234 = vrcp.pop %v1140
        %v1235 = vmul.f32 %v1020, %v1234
        %v1236 = vmul.f32 %v1022, %v1234
        %v1237 = vrcp.pop %v1143
        %v1238 = vmul.f32 %v1024, %v1237
        %v1239 = vmul.f32 %v1026, %v1237
        %v1240 = vrcp.pop %v1146
        %v1241 = vmul.f32 %v1028, %v1240
        %v1242 = vmul.f32 %v1030, %v1240
        %v1243 = vrcp.pop %v1149
        %v1244 = vmul.f32 %v1032, %v1243
        %v1245 = vmul.f32 %v1034, %v1243
        %v1246 = vrcp.pop %v1152
        %v1247 = vmul.f32 %v1036, %v1246
        %v1248 = vmul.f32 %v1038, %v1246
        %v1249 = vrcp.pop %v1155
        %v1250 = vmul.f32 %v1040, %v1249
        %v1251 = vmul.f32 %v1042, %v1249
        %v1252 = vrcp.pop %v1158
        %v1253 = vmul.f32 %v1044, %v1252
        %v1254 = vmul.f32 %v1046, %v1252
        %v1255 = vrcp.pop %v1161
        %v1256 = vmul.f32 %v1048, %v1255
        %v1257 = vmul.f32 %v1050, %v1255
        %v1258 = vrcp.pop %v1164
        %v1259 = vmul.f32 %v1052, %v1258
        %v1260 = vmul.f32 %v1054, %v1258
        %v1261 = vrcp.pop %v1167
        %v1262 = vmul.f32 %v1056, %v1261
        %v1263 = vmul.f32 %v1058, %v1261
        %v1264 = vrcp.pop %v1170
        %v1265 = vmul.f32 %v1060, %v1264
        %v1266 = vmul.f32 %v1062, %v1264
        %v1267 = vrcp.pop %v1173
        %v1268 = vmul.f32 %v1064, %v1267
        %v1269 = vmul.f32 %v1066, %v1267
        %v1270 = vrcp.pop %v1176
        %v1271 = vmul.f32 %v1068, %v1270
        %v1272 = vmul.f32 %v1070, %v1270
        %v1273 = vrcp.pop %v1179
        %v1274 = vmul.f32 %v1072, %v1273
        %v1275 = vmul.f32 %v1074, %v1273
        %v1276 = vrcp.pop %v1182
        %v1277 = vmul.f32 %v1076, %v1276
        %v1278 = vmul.f32 %v1078, %v1276
        %v1279 = vrcp.pop %v1185
        %v1280 = vmul.f32 %v1080, %v1279
        %v1281 = vmul.f32 %v1082, %v1279
        %v1282 = vrcp.pop %v1188
        %v1283 = vmul.f32 %v1084, %v1282
        %v1284 = vmul.f32 %v1086, %v1282
        %v1285 = vrcp.pop %v1191
        %v1286 = vmul.f32 %v1088, %v1285
        %v1287 = vmul.f32 %v1090, %v1285
        %v1288 = vrcp.pop %v1194
        %v1289 = vmul.f32 %v1092, %v1288
        %v1290 = vmul.f32 %v1094, %v1288
        %v1291 = vrcp.pop %v1197
        %v1292 = vmul.f32 %v1096, %v1291
        %v1293 = vmul.f32 %v1098, %v1291
        %v1294 = vrcp.pop %v1200
        %v1295 = vmul.f32 %v1100, %v1294
        %v1296 = vmul.f32 %v1102, %v1294
        %v1297 = vrcp.pop %v1203
        %v1298 = vmul.f32 %v1104, %v1297
        %v1299 = vmul.f32 %v1106, %v1297
        %v1300 = vrcp.pop %v1206
        %v1301 = vmul.f32 %v1108, %v1300
        %v1302 = vmul.f32 %v1110, %v1300
        %1303 = vst [vmem:[%s229] sm:$0xff] %v1208
        %1304 = vst [vmem:[%s229 + $0x8] sm:$0xff] %v1209
        %1305 = vst [vmem:[%s229 + $0x10] sm:$0xff] %v1211
        %1306 = vst [vmem:[%s229 + $0x18] sm:$0xff] %v1212
        %1307 = vst [vmem:[%s229 + $0x20] sm:$0xff] %v1214
        %1308 = vst [vmem:[%s229 + $0x28] sm:$0xff] %v1215
        %1309 = vst [vmem:[%s229 + $0x30] sm:$0xff] %v1217
        %1310 = vst [vmem:[%s229 + $0x38] sm:$0xff] %v1218
        %1311 = vst [vmem:[%s229 + $0x40] sm:$0xff] %v1220
        %1312 = vst [vmem:[%s229 + $0x48] sm:$0xff] %v1221
        %1313 = vst [vmem:[%s229 + $0x50] sm:$0xff] %v1223
        %1314 = vst [vmem:[%s229 + $0x58] sm:$0xff] %v1224
        %1315 = vst [vmem:[%s229 + $0x60] sm:$0xff] %v1226
        %1316 = vst [vmem:[%s229 + $0x68] sm:$0xff] %v1227
        %1317 = vst [vmem:[%s229 + $0x70] sm:$0xff] %v1229
        %1318 = vst [vmem:[%s229 + $0x78] sm:$0xff] %v1230
        %1319 = vst [vmem:[%s229 + $0x80] sm:$0xff] %v1232
        %1320 = vst [vmem:[%s229 + $0x88] sm:$0xff] %v1233
        %1321 = vst [vmem:[%s229 + $0x90] sm:$0xff] %v1235
        %1322 = vst [vmem:[%s229 + $0x98] sm:$0xff] %v1236
        %1323 = vst [vmem:[%s229 + $0xa0] sm:$0xff] %v1238
        %1324 = vst [vmem:[%s229 + $0xa8] sm:$0xff] %v1239
        %1325 = vst [vmem:[%s229 + $0xb0] sm:$0xff] %v1241
        %1326 = vst [vmem:[%s229 + $0xb8] sm:$0xff] %v1242
        %1327 = vst [vmem:[%s229 + $0xc0] sm:$0xff] %v1244
        %1328 = vst [vmem:[%s229 + $0xc8] sm:$0xff] %v1245
        %1329 = vst [vmem:[%s229 + $0xd0] sm:$0xff] %v1247
        %1330 = vst [vmem:[%s229 + $0xd8] sm:$0xff] %v1248
        %1331 = vst [vmem:[%s229 + $0xe0] sm:$0xff] %v1250
        %1332 = vst [vmem:[%s229 + $0xe8] sm:$0xff] %v1251
        %1333 = vst [vmem:[%s229 + $0xf0] sm:$0xff] %v1253
        %1334 = vst [vmem:[%s229 + $0xf8] sm:$0xff] %v1254
        %1335 = vst [vmem:[%s229 + $0x100] sm:$0xff] %v1256
        %1336 = vst [vmem:[%s229 + $0x108] sm:$0xff] %v1257
        %1337 = vst [vmem:[%s229 + $0x110] sm:$0xff] %v1259
        %1338 = vst [vmem:[%s229 + $0x118] sm:$0xff] %v1260
        %1339 = vst [vmem:[%s229 + $0x120] sm:$0xff] %v1262
        %1340 = vst [vmem:[%s229 + $0x128] sm:$0xff] %v1263
        %1341 = vst [vmem:[%s229 + $0x130] sm:$0xff] %v1265
        %1342 = vst [vmem:[%s229 + $0x138] sm:$0xff] %v1266
        %1343 = vst [vmem:[%s229 + $0x140] sm:$0xff] %v1268
        %1344 = vst [vmem:[%s229 + $0x148] sm:$0xff] %v1269
        %1345 = vst [vmem:[%s229 + $0x150] sm:$0xff] %v1271
        %1346 = vst [vmem:[%s229 + $0x158] sm:$0xff] %v1272
        %1347 = vst [vmem:[%s229 + $0x160] sm:$0xff] %v1274
        %1348 = vst [vmem:[%s229 + $0x168] sm:$0xff] %v1275
        %1349 = vst [vmem:[%s229 + $0x170] sm:$0xff] %v1277
        %1350 = vst [vmem:[%s229 + $0x178] sm:$0xff] %v1278
        %1351 = vst [vmem:[%s229 + $0x180] sm:$0xff] %v1280
        %1352 = vst [vmem:[%s229 + $0x188] sm:$0xff] %v1281
        %1353 = vst [vmem:[%s229 + $0x190] sm:$0xff] %v1283
        %1354 = vst [vmem:[%s229 + $0x198] sm:$0xff] %v1284
        %1355 = vst [vmem:[%s229 + $0x1a0] sm:$0xff] %v1286
        %1356 = vst [vmem:[%s229 + $0x1a8] sm:$0xff] %v1287
        %1357 = vst [vmem:[%s229 + $0x1b0] sm:$0xff] %v1289
        %1358 = vst [vmem:[%s229 + $0x1b8] sm:$0xff] %v1290
        %1359 = vst [vmem:[%s229 + $0x1c0] sm:$0xff] %v1292
        %1360 = vst [vmem:[%s229 + $0x1c8] sm:$0xff] %v1293
        %1361 = vst [vmem:[%s229 + $0x1d0] sm:$0xff] %v1295
        %1362 = vst [vmem:[%s229 + $0x1d8] sm:$0xff] %v1296
        %1363 = vst [vmem:[%s229 + $0x1e0] sm:$0xff] %v1298
        %1364 = vst [vmem:[%s229 + $0x1e8] sm:$0xff] %v1299
        %1365 = vst [vmem:[%s229 + $0x1f0] sm:$0xff] %v1301
        %1366 = vst [vmem:[%s229 + $0x1f8] sm:$0xff] %v1302
        %1367 = vmatprep.subr.mxu0 %v1209
        %1368 = vmatpush1.xpose.msra.mxu0 %v1208
        %1369 = vmatprep.subr.mxu0 %v1212
        %1370 = vmatpush1.xpose.msra.mxu0 %v1211
        %1371 = vmatprep.subr.mxu0 %v1215
        %1372 = vmatpush1.xpose.msra.mxu0 %v1214
        %1373 = vmatprep.subr.mxu0 %v1218
        %1374 = vmatpush1.xpose.msra.mxu0 %v1217
        %1375 = vmatprep.subr.mxu0 %v1221
        %1376 = vmatpush1.xpose.msra.mxu0 %v1220
        %1377 = vmatprep.subr.mxu0 %v1224
        %1378 = vmatpush1.xpose.msra.mxu0 %v1223
        %1379 = vmatprep.subr.mxu0 %v1227
        %1380 = vmatpush1.xpose.msra.mxu0 %v1226
        %1381 = vmatprep.subr.mxu0 %v1230
        %1382 = vmatpush1.xpose.msra.mxu0 %v1229
        %1383 = vmatprep.subr.mxu0 %v1233
        %1384 = vmatpush1.xpose.msra.mxu0 %v1232
        %1385 = vmatprep.subr.mxu0 %v1236
        %1386 = vmatpush1.xpose.msra.mxu0 %v1235
        %1387 = vmatprep.subr.mxu0 %v1239
        %1388 = vmatpush1.xpose.msra.mxu0 %v1238
        %1389 = vmatprep.subr.mxu0 %v1242
        %1390 = vmatpush1.xpose.msra.mxu0 %v1241
        %1391 = vmatprep.subr.mxu0 %v1245
        %1392 = vmatpush1.xpose.msra.mxu0 %v1244
        %1393 = vmatprep.subr.mxu0 %v1248
        %1394 = vmatpush1.xpose.msra.mxu0 %v1247
        %1395 = vmatprep.subr.mxu0 %v1251
        %1396 = vmatpush1.xpose.msra.mxu0 %v1250
        %1397 = vmatprep.subr.mxu0 %v1254
        %1398 = vmatpush1.xpose.msra.mxu0 %v1253
        %1399 = vmatprep.subr.mxu0 %v1257
        %1400 = vmatpush1.xpose.msra.mxu0 %v1256
        %1401 = vmatprep.subr.mxu0 %v1260
        %1402 = vmatpush1.xpose.msra.mxu0 %v1259
        %1403 = vmatprep.subr.mxu0 %v1263
        %1404 = vmatpush1.xpose.msra.mxu0 %v1262
        %1405 = vmatprep.subr.mxu0 %v1266
        %1406 = vmatpush1.xpose.msra.mxu0 %v1265
        %1407 = vmatprep.subr.mxu0 %v1269
        %1408 = vmatpush1.xpose.msra.mxu0 %v1268
        %1409 = vmatprep.subr.mxu0 %v1272
        %1410 = vmatpush1.xpose.msra.mxu0 %v1271
        %1411 = vmatprep.subr.mxu0 %v1275
        %1412 = vmatpush1.xpose.msra.mxu0 %v1274
        %1413 = vmatprep.subr.mxu0 %v1278
        %1414 = vmatpush1.xpose.msra.mxu0 %v1277
        %1415 = vmatprep.subr.mxu0 %v1281
        %1416 = vmatpush1.xpose.msra.mxu0 %v1280
        %1417 = vmatprep.subr.mxu0 %v1284
        %1418 = vmatpush1.xpose.msra.mxu0 %v1283
        %1419 = vmatprep.subr.mxu0 %v1287
        %1420 = vmatpush1.xpose.msra.mxu0 %v1286
        %1421 = vmatprep.subr.mxu0 %v1290
        %1422 = vmatpush1.xpose.msra.mxu0 %v1289
        %1423 = vmatprep.subr.mxu0 %v1293
        %1424 = vmatpush1.xpose.msra.mxu0 %v1292
        %1425 = vmatprep.subr.mxu0 %v1296
        %1426 = vmatpush1.xpose.msra.mxu0 %v1295
        %1427 = vmatprep.subr.mxu0 %v1299
        %1428 = vmatpush1.xpose.msra.mxu0 %v1298
        %1429 = vmatprep.subr.mxu0 %v1302
        %1430 = vmatpush1.xpose.msra.mxu0 %v1301
        %1431 = vmatprep.mubr.f32.mxu0 %v385
        %1432 = vmatmul.mubr.f32.gmra.mrb[0].mxu0 %v383
        %v1433 = vpop.f32.mrb[0].mxu0
        %v1434 = vadd.f32 0.0, %v1433
        %v1435 = vpop.f32.mrb[0].mxu0
        %v1436 = vadd.f32 0.0, %v1435
        %1437 = vmatprep.mubr.f32.mxu0 %v391
        %1438 = vmatmul.mubr.f32.gmra.mrb[0].mxu0 %v389
        %v1439 = vpop.f32.mrb[0].mxu0
        %v1440 = vadd.f32 0.0, %v1439
        %v1441 = vpop.f32.mrb[0].mxu0
        %v1442 = vadd.f32 0.0, %v1441
        %1443 = vmatprep.mubr.f32.mxu0 %v397
        %1444 = vmatmul.mubr.f32.gmra.mrb[0].mxu0 %v395
        %v1445 = vpop.f32.mrb[0].mxu0
        %v1446 = vadd.f32 0.0, %v1445
        %v1447 = vpop.f32.mrb[0].mxu0
        %v1448 = vadd.f32 0.0, %v1447
        %1449 = vmatprep.mubr.f32.mxu0 %v403
        %1450 = vmatmul.mubr.f32.gmra.mrb[0].mxu0 %v401
        %v1451 = vpop.f32.mrb[0].mxu0
        %v1452 = vadd.f32 0.0, %v1451
        %v1453 = vpop.f32.mrb[0].mxu0
        %v1454 = vadd.f32 0.0, %v1453
        %1455 = vdwg.mxu0
        %s1456 = sld [smem:[#allocation2]]
        %v1457 = vstv %s1456
        %v1458 = vmul.f32 %v1457, %v1434
        %v1459 = vmul.f32 %v1457, %v1436
        %v1460 = vmul.f32 %v1457, %v1440
        %v1461 = vmul.f32 %v1457, %v1442
        %v1462 = vmul.f32 %v1457, %v1446
        %v1463 = vmul.f32 %v1457, %v1448
        %v1464 = vmul.f32 %v1457, %v1452
        %v1465 = vmul.f32 %v1457, %v1454
        %v1466 = vadd.f32 %v1458, %v235
        %v1467 = vadd.f32 %v1459, %v236
        %v1468 = vadd.f32 %v1460, %v237
        %v1469 = vadd.f32 %v1461, %v238
        %v1470 = vadd.f32 %v1462, %v239
        %v1471 = vadd.f32 %v1463, %v240
        %v1472 = vadd.f32 %v1464, %v241
        %v1473 = vadd.f32 %v1465, %v242
        %1474 = vst [vmem:[%s222] sm:$0xff] %v1466
        %1475 = vst [vmem:[%s222 + $0x8] sm:$0xff] %v1467
        %1476 = vst [vmem:[%s222 + $0x10] sm:$0xff] %v1468
        %1477 = vst [vmem:[%s222 + $0x18] sm:$0xff] %v1469
        %1478 = vst [vmem:[%s222 + $0x20] sm:$0xff] %v1470
        %1479 = vst [vmem:[%s222 + $0x28] sm:$0xff] %v1471
        %1480 = vst [vmem:[%s222 + $0x30] sm:$0xff] %v1472
        %1481 = vst [vmem:[%s222 + $0x38] sm:$0xff] %v1473
        %s1482 = sand.u32 %s121, 1
        %s1483 = scalar_lea.sflag [#allocation4], %s1482
        %s1484 = sand.u32 %s121, 1
        %s1485 = smul.addr %s1484, 64
        %s1486 = scalar_lea.vmem [#allocation3], %s1485
        %s1487 = sand.u32 %s147, 1
        %s1488 = scalar_lea.sflag [#allocation6], %s1487
        %s1489 = sand.u32 %s147, 1
        %s1490 = smul.addr %s1489, 512
        %s1491 = scalar_lea.vmem [#allocation5], %s1490
        // Predicated region
        $region37: #{tpu_custom_call.1} parent=35 // pred_check
          %p1492 = pneg %p131
        $region38: #{tpu_custom_call.1} parent=35 // pred_check_branch
          %1494 = sbr.rel (%p1492) target = $region40
        $region39: #{tpu_custom_call.1} parent=35 // pred_region
          %s1496 = ssub.s32 1024, 1024
          %1497 = vsyncadd %s1483, %s1496
          %s1498 = smul.addr %s24, 8
          %s1499 = smul.addr %s1498, 128
          %s1500 = scalar_lea.hbm %s4, %s1499
          %s1501 = sshll.u32 %s1486, 4
          %s1502 = int_to_ptr.vmem [resolvable:$true] %s1501
          %1507 = dma.vmem_to_hbm [thread:$0]  %s1502, 1024, %s1500, %s1483, 256, 256, 16
        $region40: #{tpu_custom_call.1} parent=35 // pred_fallthru
          _
        // Predicated region
        $region41: #{tpu_custom_call.1} parent=35 // pred_check
          %p1508 = pneg %p157
        $region42: #{tpu_custom_call.1} parent=35 // pred_check_branch
          %1510 = sbr.rel (%p1508) target = $region44
        $region43: #{tpu_custom_call.1} parent=35 // pred_region
          %s1512 = ssub.s32 8192, 8192
          %1513 = vsyncadd %s1488, %s1512
          %s1514 = smul.addr %s24, 64
          %s1515 = smul.addr %s1514, 128
          %s1516 = scalar_lea.hbm %s5, %s1515
          %s1517 = sshll.u32 %s1491, 4
          %s1518 = int_to_ptr.vmem [resolvable:$true] %s1517
          %1523 = dma.vmem_to_hbm [thread:$0]  %s1518, 8192, %s1516, %s1488, 256, 256, 16
        $region44: #{tpu_custom_call.1} parent=35 // pred_fallthru
          _
      $region36: #{tpu_custom_call.1} parent=5 // pred_fallthru
        _
      %p1524 = scmp.le.s32.totalorder 2, %s19
      // Predicated region
      $region45: #{tpu_custom_call.1} parent=5 // pred_check
        %p1525 = pneg %p1524
      $region46: #{tpu_custom_call.1} parent=5 // pred_check_branch
        %1527 = sbr.rel (%p1525) target = $region48
      $region47: #{tpu_custom_call.1} parent=5 // pred_region
        %s1528 = ssub.s32 %s19, 2
        // Predicated region
        $region49: #{tpu_custom_call.1} parent=47 // pred_check
          %p1529 = pneg %p137
        $region50: #{tpu_custom_call.1} parent=47 // pred_check_branch
          %1531 = sbr.rel (%p1529) target = $region52
        $region51: #{tpu_custom_call.1} parent=47 // pred_region
          %s1532 = sand.u32 %s122, 1
          %s1533 = scalar_lea.sflag [#allocation4], %s1532
          %s1534 = sand.u32 %s122, 1
          %s1535 = smul.addr %s1534, 64
          %s1536 = scalar_lea.vmem [#allocation3], %s1535
          %1537 = dma.done %s1533, 1024
        $region52: #{tpu_custom_call.1} parent=47 // pred_fallthru
          _
        // Predicated region
        $region53: #{tpu_custom_call.1} parent=47 // pred_check
          %p1538 = pneg %p163
        $region54: #{tpu_custom_call.1} parent=47 // pred_check_branch
          %1540 = sbr.rel (%p1538) target = $region56
        $region55: #{tpu_custom_call.1} parent=47 // pred_region
          %s1541 = sand.u32 %s148, 1
          %s1542 = scalar_lea.sflag [#allocation6], %s1541
          %s1543 = sand.u32 %s148, 1
          %s1544 = smul.addr %s1543, 512
          %s1545 = scalar_lea.vmem [#allocation5], %s1544
          %1546 = dma.done %s1542, 8192
        $region56: #{tpu_custom_call.1} parent=47 // pred_fallthru
          _
      $region48: #{tpu_custom_call.1} parent=5 // pred_fallthru
        _
    $region6: #{tpu_custom_call.1} parent=1 // loop_footer
      %s23 = sadd.s32 1, %s19
    $region7: #{tpu_custom_call.1} parent=1 // loop_footer_branch
      %18 = sbr.rel target = $region3
    $region8: #{tpu_custom_call.1} parent=1 // loop_exit
      _
    %1547 = vsyncpa [#allocation4], 1
    %s1548 = scalar_lea.sflag [#allocation4], 1
    %1549 = vsyncpa %s1548, 1
    %1550 = vsyncpa [#allocation6], 1
    %s1551 = scalar_lea.sflag [#allocation6], 1
    %1552 = vsyncpa %s1551, 1

</llo_original>
